<compile_context>
chip_gen: v7x
topology: tpu7x:2x2x1
jax: 0.10.0
libtpu: 0.0.40
codegen_flags: <defaults>
</compile_context>

<pallas_src>
import functools

import jax
import jax.numpy as jnp
from jax import lax
from jax.experimental import pallas as pl
from jax.experimental.pallas import tpu as pltpu

FOCAL_ALPHA = 0.25   # cfg.MODEL.ALPHA
FOCAL_GAMMA = 2.0    # cfg.MODEL.GAMMA
NUM_CLASSES = 20     # criterion num_classes (no-object index == NUM_CLASSES)

# Padding value for queries beyond Q (only used when Q is not a tile multiple): with
# target class == "no object" the focal contribution of padded queries is exactly 0.0.
# Keep it finite (not -inf) so no 0*inf can appear.
_PAD_LOGIT = -1e9


def _round_up(x, m):
    return (x + m - 1) // m * m


def _set_criterion_kernel(logits_ref, cls_ref, box_ref, inv_whwh_ref, out_ref,
                          *, alpha, gamma, num_classes):
    # logits_ref : (B, tq, C)  natural HBM layout -> contiguous per-tile DMA (f32 or bf16)
    # cls_ref    : (B, tq)     int32, == num_classes for "no object" / padding
    # box_ref    : (B, 8, tq)  f32 rows: pred x0,y0,x1,y1 (abs xyxy), tgt cx,cy,w,h (norm)
    # inv_whwh_ref: (B, 4)     f32, 1 / image_whwh
    # out_ref    : (1, 8, tq)  f32 partial rows: [focal, l1*mask, (1-giou)*mask, mask] sums
    B, tq, C = logits_ref.shape

    tgt = cls_ref[...]                                        # (B, tq)
    mask = (tgt != num_classes).astype(jnp.float32)           # matched queries only

    # ----------------- loss_labels: sigmoid focal loss --------------------------------
    # Make queries lane-dense by transposing each (tq, C) slab to (C, tq) on the MXU
    # (identity matmul, "A @ B.T" orientation). The MXU is otherwise idle here.
    eye = jnp.where(
        lax.broadcasted_iota(jnp.int32, (C, C), 0)
        == lax.broadcasted_iota(jnp.int32, (C, C), 1), 1.0, 0.0).astype(jnp.bfloat16)
    dn = (((1,), (1,)), ((), ()))        # out[c, q] = sum_c' eye[c, c'] * x[q, c']

    focal_lane = jnp.zeros((1, tq), jnp.float32)
    # Static unroll over batch: bounds live (C, tq) temporaries to one batch at a time
    # (VMEM-friendly on v7x); for very large B switch to a fori_loop.
    for b in range(B):
        xb = logits_ref[b]                                    # (tq, C)
        if xb.dtype == jnp.bfloat16:
            # bf16 * exact {0,1} identity, f32 accumulate -> exact upcasting transpose.
            xt = lax.dot_general(eye, xb, dn, preferred_element_type=jnp.float32)
        else:
            # exact-to-~1e-7 f32 transpose via a bf16 hi/lo split (independent of the
            # compiler's f32 matmul precision policy).
            xb = xb.astype(jnp.float32)
            hi = xb.astype(jnp.bfloat16)
            lo = (xb - hi.astype(jnp.float32)).astype(jnp.bfloat16)
            xt = (lax.dot_general(eye, hi, dn, preferred_element_type=jnp.float32)
                  + lax.dot_general(eye, lo, dn, preferred_element_type=jnp.float32))
        # xt: (C, tq) f32 -- classes on sublanes, queries on lanes.

        onehot = lax.broadcasted_iota(jnp.int32, (C, tq), 0) == tgt[b][None, :]
        ax = jnp.abs(xt)
        e = jnp.exp(-ax)                                      # shared EUP exp
        log_term = jnp.log(1.0 + e)
        sx = jnp.where(onehot, xt, -xt)                       # p_t = sigmoid(sx)
        ce = jnp.maximum(-sx, 0.0) + log_term                 # -log(p_t), stable BCE
        p_t = jnp.exp(-ce)                                    # exact, no reciprocal needed
        omp = 1.0 - p_t                                       # 1 - p_t
        mod = omp * omp if float(gamma) == 2.0 else omp ** gamma
        alpha_t = jnp.where(onehot, alpha, 1.0 - alpha)
        # reduce over classes (sublanes) only; keep the lane axis for the output row.
        focal_lane = focal_lane + jnp.sum(alpha_t * mod * ce, axis=0, keepdims=True)

    # ----------------- loss_boxes: L1 + GIoU (normalized coordinates) -----------------
    # GIoU is invariant under independent x/y scaling, so normalized coords give the
    # same value as the absolute-coordinate formulation of the original module.
    iw = inv_whwh_ref[:, 0:1]                                 # (B, 1) == 1/W
    ih = inv_whwh_ref[:, 1:2]                                 # (B, 1) == 1/H
    px0 = box_ref[:, 0, :] * iw
    py0 = box_ref[:, 1, :] * ih
    px1 = box_ref[:, 2, :] * iw
    py1 = box_ref[:, 3, :] * ih
    cx = box_ref[:, 4, :]
    cy = box_ref[:, 5, :]
    tw = box_ref[:, 6, :]
    th = box_ref[:, 7, :]
    tx0 = cx - 0.5 * tw
    ty0 = cy - 0.5 * th
    tx1 = cx + 0.5 * tw
    ty1 = cy + 0.5 * th

    l1 = (jnp.abs(px0 - tx0) + jnp.abs(py0 - ty0)
          + jnp.abs(px1 - tx1) + jnp.abs(py1 - ty1))

    area_p = (px1 - px0) * (py1 - py0)
    area_t = (tx1 - tx0) * (ty1 - ty0)
    iwd = jnp.maximum(jnp.minimum(px1, tx1) - jnp.maximum(px0, tx0), 0.0)
    ihd = jnp.maximum(jnp.minimum(py1, ty1) - jnp.maximum(py0, ty0), 0.0)
    inter = iwd * ihd
    union = area_p + area_t - inter
    iou = inter / jnp.where(union > 0.0, union, 1.0)          # guard only for unmatched
    cw = jnp.maximum(px1, tx1) - jnp.minimum(px0, tx0)
    ch = jnp.maximum(py1, ty1) - jnp.minimum(py0, ty0)
    area_c = cw * ch
    giou = iou - (area_c - union) / jnp.where(area_c > 0.0, area_c, 1.0)

    l1_lane = jnp.sum(l1 * mask, axis=0, keepdims=True)              # (1, tq)
    giou_lane = jnp.sum((1.0 - giou) * mask, axis=0, keepdims=True)  # (1, tq)
    nb_lane = jnp.sum(mask, axis=0, keepdims=True)                   # (1, tq)

    # Per-lane partial rows; the lane/grid reduction happens in the wrapper.
    out_ref[0, 0:1, :] = focal_lane
    out_ref[0, 1:2, :] = l1_lane
    out_ref[0, 2:3, :] = giou_lane
    out_ref[0, 3:4, :] = nb_lane


@functools.partial(jax.jit, static_argnames=("num_classes", "block_q"))
def set_criterion_forward(pred_logits, pred_boxes, target_classes,
                          tgt_boxes_cxcywh, image_whwh, *,
                          num_classes, block_q=128):
    """Main 'labels' + 'boxes' losses of SetCriterionDynamicK given a dense matcher result.

    pred_logits may be float32 or bfloat16 (upcast happens inside the kernel).
    """
    B, Q, C = pred_logits.shape
    assert block_q % 128 == 0
    tq = min(block_q, _round_up(Q, 128))
    grid = pl.cdiv(Q, tq)
    qpad = grid * tq

    # Logits stay in their natural (B, Q, C) layout -> no wrapper transpose.  A pad (one
    # cheap copy) is only emitted when Q is not a multiple of the tile size.
    logits = pred_logits
    cls_p = target_classes.astype(jnp.int32)
    if qpad != Q:
        logits = jnp.pad(logits, ((0, 0), (0, qpad - Q), (0, 0)),
                         constant_values=_PAD_LOGIT)
        cls_p = jnp.pad(cls_p, ((0, 0), (0, qpad - Q)), constant_values=num_classes)

    # Small side tensors: stack pred xyxy + tgt cxcywh into one (B, 8, qpad) plane tensor
    # (dense sublanes per batch; single extra HBM stream).
    boxes8 = jnp.concatenate([pred_boxes.astype(jnp.float32),
                              tgt_boxes_cxcywh.astype(jnp.float32)], axis=-1)  # (B, Q, 8)
    boxes8 = jnp.transpose(boxes8, (0, 2, 1))                                   # (B, 8, Q)
    if qpad != Q:
        boxes8 = jnp.pad(boxes8, ((0, 0), (0, 0), (0, qpad - Q)))
    inv_whwh = 1.0 / image_whwh.astype(jnp.float32)                             # (B, 4)

    kern = functools.partial(_set_criterion_kernel, alpha=FOCAL_ALPHA,
                             gamma=FOCAL_GAMMA, num_classes=num_classes)
    out = pl.pallas_call(
        kern,
        grid=(grid,),
        out_shape=jax.ShapeDtypeStruct((grid, 8, tq), jnp.float32),
        in_specs=[
            pl.BlockSpec((B, tq, C), lambda i: (0, i, 0)),   # logits (natural layout)
            pl.BlockSpec((B, tq), lambda i: (0, i)),         # target classes
            pl.BlockSpec((B, 8, tq), lambda i: (0, 0, i)),   # stacked box planes
            pl.BlockSpec((B, 4), lambda i: (0, 0)),          # 1 / image_whwh
        ],
        out_specs=pl.BlockSpec((1, 8, tq), lambda i: (i, 0, 0)),
        compiler_params=pltpu.CompilerParams(
            dimension_semantics=("parallel",),               # v7x: shard tiles over 2 TCs
            vmem_limit_bytes=32 * 1024 * 1024,               # safe on v5e/v6e/v7x
        ),
    )(logits, cls_p, boxes8, inv_whwh)

    sums = jnp.sum(out[:, :4, :], axis=(0, 2))               # [focal, l1, giou, num_boxes]
    nb = jnp.maximum(sums[3], 1.0)
    return {"loss_ce": sums[0] / nb,
            "loss_bbox": sums[1] / nb,
            "loss_giou": sums[2] / nb}


def _reference(pred_logits, pred_boxes, target_classes, tgt_boxes_cxcywh, image_whwh,
               num_classes):
    """Plain-JAX mirror of the PyTorch loss math, for a sanity check."""
    B, Q, C = pred_logits.shape
    matched = (target_classes != num_classes).astype(jnp.float32)
    onehot = jax.nn.one_hot(target_classes, C + 1, dtype=jnp.float32)[..., :-1]
    x = pred_logits.astype(jnp.float32)
    p = jax.nn.sigmoid(x)
    ce = jnp.maximum(x, 0.0) - x * onehot + jnp.log1p(jnp.exp(-jnp.abs(x)))
    p_t = p * onehot + (1 - p) * (1 - onehot)
    focal = ((FOCAL_ALPHA * onehot + (1 - FOCAL_ALPHA) * (1 - onehot))
             * ce * (1 - p_t) ** FOCAL_GAMMA)
    nb = jnp.maximum(jnp.sum(matched), 1.0)
    loss_ce = jnp.sum(focal) / nb

    boxes_norm = pred_boxes / image_whwh[:, None, :]
    cx, cy, w, h = [tgt_boxes_cxcywh[..., i] for i in range(4)]
    t_xyxy_n = jnp.stack([cx - w / 2, cy - h / 2, cx + w / 2, cy + h / 2], -1)
    loss_bbox = jnp.sum(jnp.abs(boxes_norm - t_xyxy_n).sum(-1) * matched) / nb

    # GIoU on absolute boxes, exactly like the PyTorch original.
    t_xyxy_abs = t_xyxy_n * image_whwh[:, None, :]
    px0, py0, px1, py1 = [pred_boxes[..., i] for i in range(4)]
    tx0, ty0, tx1, ty1 = [t_xyxy_abs[..., i] for i in range(4)]
    area_p = (px1 - px0) * (py1 - py0)
    area_t = (tx1 - tx0) * (ty1 - ty0)
    inter = (jnp.maximum(jnp.minimum(px1, tx1) - jnp.maximum(px0, tx0), 0.0)
             * jnp.maximum(jnp.minimum(py1, ty1) - jnp.maximum(py0, ty0), 0.0))
    union = area_p + area_t - inter
    iou = inter / jnp.where(union > 0, union, 1.0)
    area_c = ((jnp.maximum(px1, tx1) - jnp.minimum(px0, tx0))
              * (jnp.maximum(py1, ty1) - jnp.minimum(py0, ty0)))
    giou = iou - (area_c - union) / jnp.where(area_c > 0, area_c, 1.0)
    loss_giou = jnp.sum((1.0 - giou) * matched) / nb
    return {"loss_ce": loss_ce, "loss_bbox": loss_bbox, "loss_giou": loss_giou}


if __name__ == "__main__":
    B, Q, C = 2, 256, NUM_CLASSES          # small but realistic: grid of 2 Q-tiles
    key = jax.random.PRNGKey(0)
    k1, k2, k3, k4, k5 = jax.random.split(key, 5)

    pred_logits = jax.random.normal(k1, (B, Q, C), jnp.float32)

    img_wh = jnp.array([[640.0, 480.0], [512.0, 384.0]], jnp.float32)
    image_whwh = jnp.concatenate([img_wh, img_wh], axis=-1)          # (B, 4)

    # predicted boxes: valid normalized cxcywh -> absolute xyxy
    praw = jax.random.uniform(k2, (B, Q, 4), minval=0.3, maxval=0.7)
    pw = praw[..., 2] * 0.3 + 0.05
    ph = praw[..., 3] * 0.3 + 0.05
    pcx, pcy = praw[..., 0], praw[..., 1]
    pred_boxes = jnp.stack([pcx - pw / 2, pcy - ph / 2, pcx + pw / 2, pcy + ph / 2],
                           -1) * image_whwh[:, None, :]              # (B, Q, 4) abs xyxy

    # synthetic dense matcher output.  NOTE: by construction (labels < C) the matcher
    # never assigns the no-object index to a matched query, so the in-kernel mask
    # (tgt != num_classes) exactly reproduces matched_mask.
    matched_mask = jax.random.bernoulli(k3, 0.15, (B, Q)).astype(jnp.float32)
    labels = jax.random.randint(k4, (B, Q), 0, C)
    target_classes = jnp.where(matched_mask > 0, labels, C).astype(jnp.int32)

    traw = jax.random.uniform(k5, (B, Q, 4), minval=0.3, maxval=0.7)
    tw = traw[..., 2] * 0.3 + 0.05
    th = traw[..., 3] * 0.3 + 0.05
    tcx, tcy = traw[..., 0], traw[..., 1]
    tgt_boxes_cxcywh = jnp.stack([tcx, tcy, tw, th], -1) * matched_mask[..., None]

    losses = set_criterion_forward(pred_logits, pred_boxes, target_classes,
                                   tgt_boxes_cxcywh, image_whwh, num_classes=C)
    jax.block_until_ready(losses)

    ref = _reference(pred_logits, pred_boxes, target_classes, tgt_boxes_cxcywh,
                     image_whwh, C)
    for k in losses:
        assert jnp.allclose(losses[k], ref[k], rtol=1e-4, atol=1e-4), (
            k, float(losses[k]), float(ref[k]))

    print("KERNEL_OK")
</pallas_src>

<mosaic_0001>
module attributes {stable_mosaic.version = 11 : i64} {
  func.func @_set_criterion_kernel(%arg0: i32, %arg1: memref<2x128x20xf32, #tpu.memory_space<vmem>>, %arg2: memref<2x128xi32, #tpu.memory_space<vmem>>, %arg3: memref<2x8x128xf32, #tpu.memory_space<vmem>>, %arg4: memref<2x4xf32, #tpu.memory_space<vmem>>, %arg5: memref<1x8x128xf32, #tpu.memory_space<vmem>>) attributes {dimension_semantics = [#tpu.dimension_semantics<parallel>], iteration_bounds = array<i64: 2>, scalar_prefetch = 0 : i64, scratch_operands = 0 : i64, tpu.core_type = #tpu.core_type<tc>, window_params = [{transform_indices = @transform_0, window_bounds = array<i64: 2, 128, 20>}, {transform_indices = @transform_1, window_bounds = array<i64: 2, 128>}, {transform_indices = @transform_2, window_bounds = array<i64: 2, 8, 128>}, {pipeline_mode = #tpu.pipeline_mode<synchronous>, transform_indices = @transform_3, window_bounds = array<i64: 2, 4>}, {transform_indices = @transform_4, window_bounds = array<i64: 1, 8, 128>}]} {
    %c0 = arith.constant 0 : index
    %c0_0 = arith.constant 0 : index
    %0 = vector.load %arg2[%c0, %c0_0] : memref<2x128xi32, #tpu.memory_space<vmem>>, vector<2x128xi32>
    %c20_i32 = arith.constant 20 : i32
    %1 = vector.broadcast %c20_i32 : i32 to vector<2x128xi32>
    %2 = arith.cmpi ne, %0, %1 : vector<2x128xi32>
    %3 = arith.extui %2 : vector<2x128xi1> to vector<2x128xi32>
    %4 = arith.sitofp %3 : vector<2x128xi32> to vector<2x128xf32>
    %5 = tpu.iota {dimensions = array<i32: 0>} : vector<20x20xi32>
    %6 = tpu.iota {dimensions = array<i32: 1>} : vector<20x20xi32>
    %7 = arith.cmpi eq, %5, %6 : vector<20x20xi32>
    %cst = arith.constant 1.000000e+00 : f32
    %cst_1 = arith.constant 0.000000e+00 : f32
    %8 = vector.broadcast %cst : f32 to vector<20x20xf32>
    %9 = vector.broadcast %cst_1 : f32 to vector<20x20xf32>
    %10 = arith.select %7, %8, %9 : vector<20x20xi1>, vector<20x20xf32>
    %11 = arith.truncf %10 : vector<20x20xf32> to vector<20x20xbf16>
    %cst_2 = arith.constant 0.000000e+00 : f32
    %12 = vector.broadcast %cst_2 : f32 to vector<1x128xf32>
    %c0_3 = arith.constant 0 : index
    %c0_4 = arith.constant 0 : index
    %c0_5 = arith.constant 0 : index
    %13 = vector.load %arg1[%c0_3, %c0_4, %c0_5] : memref<2x128x20xf32, #tpu.memory_space<vmem>>, vector<1x128x20xf32>
    %14 = vector.shape_cast %13 : vector<1x128x20xf32> to vector<128x20xf32>
    %15 = arith.truncf %14 : vector<128x20xf32> to vector<128x20xbf16>
    %16 = arith.extf %15 : vector<128x20xbf16> to vector<128x20xf32>
    %17 = arith.subf %14, %16 : vector<128x20xf32>
    %18 = arith.truncf %17 : vector<128x20xf32> to vector<128x20xbf16>
    %cst_6 = arith.constant dense<0.000000e+00> : vector<20x128xf32>
    %19 = tpu.matmul %11, %15, %cst_6 {dimension_numbers = #tpu.dot_dimension_numbers<[1], [1], [0], [0], [0, 0, 1, 0], [], []>} : vector<20x20xbf16>, vector<128x20xbf16>, vector<20x128xf32> -> vector<20x128xf32>
    %cst_7 = arith.constant dense<0.000000e+00> : vector<20x128xf32>
    %20 = tpu.matmul %11, %18, %cst_7 {dimension_numbers = #tpu.dot_dimension_numbers<[1], [1], [0], [0], [0, 0, 1, 0], [], []>} : vector<20x20xbf16>, vector<128x20xbf16>, vector<20x128xf32> -> vector<20x128xf32>
    %21 = arith.addf %19, %20 : vector<20x128xf32>
    %22 = tpu.iota {dimensions = array<i32: 0>} : vector<20x128xi32>
    %23 = vector.extract_strided_slice %0 {offsets = [0, 0], sizes = [1, 128], strides = [1, 1]} : vector<2x128xi32> to vector<1x128xi32>
    %24 = vector.shape_cast %23 : vector<1x128xi32> to vector<128xi32>
    %25 = vector.shape_cast %24 : vector<128xi32> to vector<1x128xi32>
    %26 = vector.broadcast %25 : vector<1x128xi32> to vector<20x128xi32>
    %27 = arith.cmpi eq, %22, %26 : vector<20x128xi32>
    %28 = math.absf %21 : vector<20x128xf32>
    %cst_8 = arith.constant 0.000000e+00 : f32
    %29 = vector.broadcast %cst_8 : f32 to vector<20x128xf32>
    %30 = arith.subf %29, %28 : vector<20x128xf32>
    %31 = math.exp %30 : vector<20x128xf32>
    %cst_9 = arith.constant 1.000000e+00 : f32
    %32 = vector.broadcast %cst_9 : f32 to vector<20x128xf32>
    %33 = arith.addf %32, %31 : vector<20x128xf32>
    %34 = math.log %33 : vector<20x128xf32>
    %cst_10 = arith.constant 0.000000e+00 : f32
    %35 = vector.broadcast %cst_10 : f32 to vector<20x128xf32>
    %36 = arith.subf %35, %21 : vector<20x128xf32>
    %37 = arith.select %27, %21, %36 : vector<20x128xi1>, vector<20x128xf32>
    %cst_11 = arith.constant 0.000000e+00 : f32
    %38 = vector.broadcast %cst_11 : f32 to vector<20x128xf32>
    %39 = arith.subf %38, %37 : vector<20x128xf32>
    %cst_12 = arith.constant 0.000000e+00 : f32
    %40 = vector.broadcast %cst_12 : f32 to vector<20x128xf32>
    %41 = arith.maximumf %39, %40 : vector<20x128xf32>
    %42 = arith.addf %41, %34 : vector<20x128xf32>
    %cst_13 = arith.constant 0.000000e+00 : f32
    %43 = vector.broadcast %cst_13 : f32 to vector<20x128xf32>
    %44 = arith.subf %43, %42 : vector<20x128xf32>
    %45 = math.exp %44 : vector<20x128xf32>
    %cst_14 = arith.constant 1.000000e+00 : f32
    %46 = vector.broadcast %cst_14 : f32 to vector<20x128xf32>
    %47 = arith.subf %46, %45 : vector<20x128xf32>
    %48 = arith.mulf %47, %47 : vector<20x128xf32>
    %cst_15 = arith.constant 2.500000e-01 : f32
    %cst_16 = arith.constant 7.500000e-01 : f32
    %49 = vector.broadcast %cst_15 : f32 to vector<20x128xf32>
    %50 = vector.broadcast %cst_16 : f32 to vector<20x128xf32>
    %51 = arith.select %27, %49, %50 : vector<20x128xi1>, vector<20x128xf32>
    %52 = arith.mulf %51, %48 : vector<20x128xf32>
    %53 = arith.mulf %52, %42 : vector<20x128xf32>
    %cst_17 = arith.constant dense<0.000000e+00> : vector<128xf32>
    %54 = vector.multi_reduction <add>, %53, %cst_17 [0] : vector<20x128xf32> to vector<128xf32>
    %55 = vector.shape_cast %54 : vector<128xf32> to vector<1x128xf32>
    %56 = arith.addf %12, %55 : vector<1x128xf32>
    %c1 = arith.constant 1 : index
    %c0_18 = arith.constant 0 : index
    %c0_19 = arith.constant 0 : index
    %57 = vector.load %arg1[%c1, %c0_18, %c0_19] : memref<2x128x20xf32, #tpu.memory_space<vmem>>, vector<1x128x20xf32>
    %58 = vector.shape_cast %57 : vector<1x128x20xf32> to vector<128x20xf32>
    %59 = arith.truncf %58 : vector<128x20xf32> to vector<128x20xbf16>
    %60 = arith.extf %59 : vector<128x20xbf16> to vector<128x20xf32>
    %61 = arith.subf %58, %60 : vector<128x20xf32>
    %62 = arith.truncf %61 : vector<128x20xf32> to vector<128x20xbf16>
    %cst_20 = arith.constant dense<0.000000e+00> : vector<20x128xf32>
    %63 = tpu.matmul %11, %59, %cst_20 {dimension_numbers = #tpu.dot_dimension_numbers<[1], [1], [0], [0], [0, 0, 1, 0], [], []>} : vector<20x20xbf16>, vector<128x20xbf16>, vector<20x128xf32> -> vector<20x128xf32>
    %cst_21 = arith.constant dense<0.000000e+00> : vector<20x128xf32>
    %64 = tpu.matmul %11, %62, %cst_21 {dimension_numbers = #tpu.dot_dimension_numbers<[1], [1], [0], [0], [0, 0, 1, 0], [], []>} : vector<20x20xbf16>, vector<128x20xbf16>, vector<20x128xf32> -> vector<20x128xf32>
    %65 = arith.addf %63, %64 : vector<20x128xf32>
    %66 = tpu.iota {dimensions = array<i32: 0>} : vector<20x128xi32>
    %67 = vector.extract_strided_slice %0 {offsets = [1, 0], sizes = [1, 128], strides = [1, 1]} : vector<2x128xi32> to vector<1x128xi32>
    %68 = vector.shape_cast %67 : vector<1x128xi32> to vector<128xi32>
    %69 = vector.shape_cast %68 : vector<128xi32> to vector<1x128xi32>
    %70 = vector.broadcast %69 : vector<1x128xi32> to vector<20x128xi32>
    %71 = arith.cmpi eq, %66, %70 : vector<20x128xi32>
    %72 = math.absf %65 : vector<20x128xf32>
    %cst_22 = arith.constant 0.000000e+00 : f32
    %73 = vector.broadcast %cst_22 : f32 to vector<20x128xf32>
    %74 = arith.subf %73, %72 : vector<20x128xf32>
    %75 = math.exp %74 : vector<20x128xf32>
    %cst_23 = arith.constant 1.000000e+00 : f32
    %76 = vector.broadcast %cst_23 : f32 to vector<20x128xf32>
    %77 = arith.addf %76, %75 : vector<20x128xf32>
    %78 = math.log %77 : vector<20x128xf32>
    %cst_24 = arith.constant 0.000000e+00 : f32
    %79 = vector.broadcast %cst_24 : f32 to vector<20x128xf32>
    %80 = arith.subf %79, %65 : vector<20x128xf32>
    %81 = arith.select %71, %65, %80 : vector<20x128xi1>, vector<20x128xf32>
    %cst_25 = arith.constant 0.000000e+00 : f32
    %82 = vector.broadcast %cst_25 : f32 to vector<20x128xf32>
    %83 = arith.subf %82, %81 : vector<20x128xf32>
    %cst_26 = arith.constant 0.000000e+00 : f32
    %84 = vector.broadcast %cst_26 : f32 to vector<20x128xf32>
    %85 = arith.maximumf %83, %84 : vector<20x128xf32>
    %86 = arith.addf %85, %78 : vector<20x128xf32>
    %cst_27 = arith.constant 0.000000e+00 : f32
    %87 = vector.broadcast %cst_27 : f32 to vector<20x128xf32>
    %88 = arith.subf %87, %86 : vector<20x128xf32>
    %89 = math.exp %88 : vector<20x128xf32>
    %cst_28 = arith.constant 1.000000e+00 : f32
    %90 = vector.broadcast %cst_28 : f32 to vector<20x128xf32>
    %91 = arith.subf %90, %89 : vector<20x128xf32>
    %92 = arith.mulf %91, %91 : vector<20x128xf32>
    %cst_29 = arith.constant 2.500000e-01 : f32
    %cst_30 = arith.constant 7.500000e-01 : f32
    %93 = vector.broadcast %cst_29 : f32 to vector<20x128xf32>
    %94 = vector.broadcast %cst_30 : f32 to vector<20x128xf32>
    %95 = arith.select %71, %93, %94 : vector<20x128xi1>, vector<20x128xf32>
    %96 = arith.mulf %95, %92 : vector<20x128xf32>
    %97 = arith.mulf %96, %86 : vector<20x128xf32>
    %cst_31 = arith.constant dense<0.000000e+00> : vector<128xf32>
    %98 = vector.multi_reduction <add>, %97, %cst_31 [0] : vector<20x128xf32> to vector<128xf32>
    %99 = vector.shape_cast %98 : vector<128xf32> to vector<1x128xf32>
    %100 = arith.addf %56, %99 : vector<1x128xf32>
    %c0_32 = arith.constant 0 : index
    %c0_33 = arith.constant 0 : index
    %101 = vector.load %arg4[%c0_32, %c0_33] : memref<2x4xf32, #tpu.memory_space<vmem>>, vector<2x1xf32>
    %c0_34 = arith.constant 0 : index
    %c1_35 = arith.constant 1 : index
    %102 = vector.load %arg4[%c0_34, %c1_35] : memref<2x4xf32, #tpu.memory_space<vmem>>, vector<2x1xf32>
    %c0_36 = arith.constant 0 : index
    %c0_37 = arith.constant 0 : index
    %c0_38 = arith.constant 0 : index
    %103 = vector.load %arg3[%c0_36, %c0_37, %c0_38] : memref<2x8x128xf32, #tpu.memory_space<vmem>>, vector<2x1x128xf32>
    %104 = vector.shape_cast %103 : vector<2x1x128xf32> to vector<2x128xf32>
    %105 = vector.broadcast %101 : vector<2x1xf32> to vector<2x128xf32>
    %106 = arith.mulf %104, %105 : vector<2x128xf32>
    %c0_39 = arith.constant 0 : index
    %c1_40 = arith.constant 1 : index
    %c0_41 = arith.constant 0 : index
    %107 = vector.load %arg3[%c0_39, %c1_40, %c0_41] : memref<2x8x128xf32, #tpu.memory_space<vmem>>, vector<2x1x128xf32>
    %108 = vector.shape_cast %107 : vector<2x1x128xf32> to vector<2x128xf32>
    %109 = vector.broadcast %102 : vector<2x1xf32> to vector<2x128xf32>
    %110 = arith.mulf %108, %109 : vector<2x128xf32>
    %c0_42 = arith.constant 0 : index
    %c2 = arith.constant 2 : index
    %c0_43 = arith.constant 0 : index
    %111 = vector.load %arg3[%c0_42, %c2, %c0_43] : memref<2x8x128xf32, #tpu.memory_space<vmem>>, vector<2x1x128xf32>
    %112 = vector.shape_cast %111 : vector<2x1x128xf32> to vector<2x128xf32>
    %113 = vector.broadcast %101 : vector<2x1xf32> to vector<2x128xf32>
    %114 = arith.mulf %112, %113 : vector<2x128xf32>
    %c0_44 = arith.constant 0 : index
    %c3 = arith.constant 3 : index
    %c0_45 = arith.constant 0 : index
    %115 = vector.load %arg3[%c0_44, %c3, %c0_45] : memref<2x8x128xf32, #tpu.memory_space<vmem>>, vector<2x1x128xf32>
    %116 = vector.shape_cast %115 : vector<2x1x128xf32> to vector<2x128xf32>
    %117 = vector.broadcast %102 : vector<2x1xf32> to vector<2x128xf32>
    %118 = arith.mulf %116, %117 : vector<2x128xf32>
    %c0_46 = arith.constant 0 : index
    %c4 = arith.constant 4 : index
    %c0_47 = arith.constant 0 : index
    %119 = vector.load %arg3[%c0_46, %c4, %c0_47] : memref<2x8x128xf32, #tpu.memory_space<vmem>>, vector<2x1x128xf32>
    %120 = vector.shape_cast %119 : vector<2x1x128xf32> to vector<2x128xf32>
    %c0_48 = arith.constant 0 : index
    %c5 = arith.constant 5 : index
    %c0_49 = arith.constant 0 : index
    %121 = vector.load %arg3[%c0_48, %c5, %c0_49] : memref<2x8x128xf32, #tpu.memory_space<vmem>>, vector<2x1x128xf32>
    %122 = vector.shape_cast %121 : vector<2x1x128xf32> to vector<2x128xf32>
    %c0_50 = arith.constant 0 : index
    %c6 = arith.constant 6 : index
    %c0_51 = arith.constant 0 : index
    %123 = vector.load %arg3[%c0_50, %c6, %c0_51] : memref<2x8x128xf32, #tpu.memory_space<vmem>>, vector<2x1x128xf32>
    %124 = vector.shape_cast %123 : vector<2x1x128xf32> to vector<2x128xf32>
    %c0_52 = arith.constant 0 : index
    %c7 = arith.constant 7 : index
    %c0_53 = arith.constant 0 : index
    %125 = vector.load %arg3[%c0_52, %c7, %c0_53] : memref<2x8x128xf32, #tpu.memory_space<vmem>>, vector<2x1x128xf32>
    %126 = vector.shape_cast %125 : vector<2x1x128xf32> to vector<2x128xf32>
    %cst_54 = arith.constant 5.000000e-01 : f32
    %127 = vector.broadcast %cst_54 : f32 to vector<2x128xf32>
    %128 = arith.mulf %127, %124 : vector<2x128xf32>
    %129 = arith.subf %120, %128 : vector<2x128xf32>
    %cst_55 = arith.constant 5.000000e-01 : f32
    %130 = vector.broadcast %cst_55 : f32 to vector<2x128xf32>
    %131 = arith.mulf %130, %126 : vector<2x128xf32>
    %132 = arith.subf %122, %131 : vector<2x128xf32>
    %cst_56 = arith.constant 5.000000e-01 : f32
    %133 = vector.broadcast %cst_56 : f32 to vector<2x128xf32>
    %134 = arith.mulf %133, %124 : vector<2x128xf32>
    %135 = arith.addf %120, %134 : vector<2x128xf32>
    %cst_57 = arith.constant 5.000000e-01 : f32
    %136 = vector.broadcast %cst_57 : f32 to vector<2x128xf32>
    %137 = arith.mulf %136, %126 : vector<2x128xf32>
    %138 = arith.addf %122, %137 : vector<2x128xf32>
    %139 = arith.subf %106, %129 : vector<2x128xf32>
    %140 = math.absf %139 : vector<2x128xf32>
    %141 = arith.subf %110, %132 : vector<2x128xf32>
    %142 = math.absf %141 : vector<2x128xf32>
    %143 = arith.addf %140, %142 : vector<2x128xf32>
    %144 = arith.subf %114, %135 : vector<2x128xf32>
    %145 = math.absf %144 : vector<2x128xf32>
    %146 = arith.addf %143, %145 : vector<2x128xf32>
    %147 = arith.subf %118, %138 : vector<2x128xf32>
    %148 = math.absf %147 : vector<2x128xf32>
    %149 = arith.addf %146, %148 : vector<2x128xf32>
    %150 = arith.subf %114, %106 : vector<2x128xf32>
    %151 = arith.subf %118, %110 : vector<2x128xf32>
    %152 = arith.mulf %150, %151 : vector<2x128xf32>
    %153 = arith.subf %135, %129 : vector<2x128xf32>
    %154 = arith.subf %138, %132 : vector<2x128xf32>
    %155 = arith.mulf %153, %154 : vector<2x128xf32>
    %156 = arith.minimumf %114, %135 : vector<2x128xf32>
    %157 = arith.maximumf %106, %129 : vector<2x128xf32>
    %158 = arith.subf %156, %157 : vector<2x128xf32>
    %cst_58 = arith.constant 0.000000e+00 : f32
    %159 = vector.broadcast %cst_58 : f32 to vector<2x128xf32>
    %160 = arith.maximumf %158, %159 : vector<2x128xf32>
    %161 = arith.minimumf %118, %138 : vector<2x128xf32>
    %162 = arith.maximumf %110, %132 : vector<2x128xf32>
    %163 = arith.subf %161, %162 : vector<2x128xf32>
    %cst_59 = arith.constant 0.000000e+00 : f32
    %164 = vector.broadcast %cst_59 : f32 to vector<2x128xf32>
    %165 = arith.maximumf %163, %164 : vector<2x128xf32>
    %166 = arith.mulf %160, %165 : vector<2x128xf32>
    %167 = arith.addf %152, %155 : vector<2x128xf32>
    %168 = arith.subf %167, %166 : vector<2x128xf32>
    %cst_60 = arith.constant 0.000000e+00 : f32
    %169 = vector.broadcast %cst_60 : f32 to vector<2x128xf32>
    %170 = arith.cmpf ogt, %168, %169 : vector<2x128xf32>
    %cst_61 = arith.constant 1.000000e+00 : f32
    %171 = vector.broadcast %cst_61 : f32 to vector<2x128xf32>
    %172 = arith.select %170, %168, %171 : vector<2x128xi1>, vector<2x128xf32>
    %173 = arith.divf %166, %172 : vector<2x128xf32>
    %174 = arith.maximumf %114, %135 : vector<2x128xf32>
    %175 = arith.minimumf %106, %129 : vector<2x128xf32>
    %176 = arith.subf %174, %175 : vector<2x128xf32>
    %177 = arith.maximumf %118, %138 : vector<2x128xf32>
    %178 = arith.minimumf %110, %132 : vector<2x128xf32>
    %179 = arith.subf %177, %178 : vector<2x128xf32>
    %180 = arith.mulf %176, %179 : vector<2x128xf32>
    %181 = arith.subf %180, %168 : vector<2x128xf32>
    %cst_62 = arith.constant 0.000000e+00 : f32
    %182 = vector.broadcast %cst_62 : f32 to vector<2x128xf32>
    %183 = arith.cmpf ogt, %180, %182 : vector<2x128xf32>
    %cst_63 = arith.constant 1.000000e+00 : f32
    %184 = vector.broadcast %cst_63 : f32 to vector<2x128xf32>
    %185 = arith.select %183, %180, %184 : vector<2x128xi1>, vector<2x128xf32>
    %186 = arith.divf %181, %185 : vector<2x128xf32>
    %187 = arith.subf %173, %186 : vector<2x128xf32>
    %188 = arith.mulf %149, %4 : vector<2x128xf32>
    %cst_64 = arith.constant dense<0.000000e+00> : vector<128xf32>
    %189 = vector.multi_reduction <add>, %188, %cst_64 [0] : vector<2x128xf32> to vector<128xf32>
    %190 = vector.shape_cast %189 : vector<128xf32> to vector<1x128xf32>
    %cst_65 = arith.constant 1.000000e+00 : f32
    %191 = vector.broadcast %cst_65 : f32 to vector<2x128xf32>
    %192 = arith.subf %191, %187 : vector<2x128xf32>
    %193 = arith.mulf %192, %4 : vector<2x128xf32>
    %cst_66 = arith.constant dense<0.000000e+00> : vector<128xf32>
    %194 = vector.multi_reduction <add>, %193, %cst_66 [0] : vector<2x128xf32> to vector<128xf32>
    %195 = vector.shape_cast %194 : vector<128xf32> to vector<1x128xf32>
    %cst_67 = arith.constant dense<0.000000e+00> : vector<128xf32>
    %196 = vector.multi_reduction <add>, %4, %cst_67 [0] : vector<2x128xf32> to vector<128xf32>
    %197 = vector.shape_cast %196 : vector<128xf32> to vector<1x128xf32>
    %c0_68 = arith.constant 0 : index
    %c0_69 = arith.constant 0 : index
    %c0_70 = arith.constant 0 : index
    %198 = vector.load %arg5[%c0_68, %c0_69, %c0_70] : memref<1x8x128xf32, #tpu.memory_space<vmem>>, vector<1x1x128xf32>
    %199 = vector.shape_cast %198 : vector<1x1x128xf32> to vector<1x128xf32>
    %200 = vector.shape_cast %100 : vector<1x128xf32> to vector<1x1x128xf32>
    tpu.vector_store %arg5[%c0_68, %c0_69, %c0_70], %200 {strides = array<i32>} : memref<1x8x128xf32, #tpu.memory_space<vmem>>, vector<1x1x128xf32>,
    %c0_71 = arith.constant 0 : index
    %c1_72 = arith.constant 1 : index
    %c0_73 = arith.constant 0 : index
    %201 = vector.load %arg5[%c0_71, %c1_72, %c0_73] : memref<1x8x128xf32, #tpu.memory_space<vmem>>, vector<1x1x128xf32>
    %202 = vector.shape_cast %201 : vector<1x1x128xf32> to vector<1x128xf32>
    %203 = vector.shape_cast %190 : vector<1x128xf32> to vector<1x1x128xf32>
    tpu.vector_store %arg5[%c0_71, %c1_72, %c0_73], %203 {strides = array<i32>} : memref<1x8x128xf32, #tpu.memory_space<vmem>>, vector<1x1x128xf32>,
    %c0_74 = arith.constant 0 : index
    %c2_75 = arith.constant 2 : index
    %c0_76 = arith.constant 0 : index
    %204 = vector.load %arg5[%c0_74, %c2_75, %c0_76] : memref<1x8x128xf32, #tpu.memory_space<vmem>>, vector<1x1x128xf32>
    %205 = vector.shape_cast %204 : vector<1x1x128xf32> to vector<1x128xf32>
    %206 = vector.shape_cast %195 : vector<1x128xf32> to vector<1x1x128xf32>
    tpu.vector_store %arg5[%c0_74, %c2_75, %c0_76], %206 {strides = array<i32>} : memref<1x8x128xf32, #tpu.memory_space<vmem>>, vector<1x1x128xf32>,
    %c0_77 = arith.constant 0 : index
    %c3_78 = arith.constant 3 : index
    %c0_79 = arith.constant 0 : index
    %207 = vector.load %arg5[%c0_77, %c3_78, %c0_79] : memref<1x8x128xf32, #tpu.memory_space<vmem>>, vector<1x1x128xf32>
    %208 = vector.shape_cast %207 : vector<1x1x128xf32> to vector<1x128xf32>
    %209 = vector.shape_cast %197 : vector<1x128xf32> to vector<1x1x128xf32>
    tpu.vector_store %arg5[%c0_77, %c3_78, %c0_79], %209 {strides = array<i32>} : memref<1x8x128xf32, #tpu.memory_space<vmem>>, vector<1x1x128xf32>,
    return
  }
  func.func @transform_0(%arg0: i32) -> (i32, i32, i32) {
    %c0_i32 = arith.constant 0 : i32
    %c0_i32_0 = arith.constant 0 : i32
    %c0_i32_1 = arith.constant 0 : i32
    return %c0_i32, %arg0, %c0_i32_0 : i32, i32, i32
  }
  func.func @transform_1(%arg0: i32) -> (i32, i32) {
    %c0_i32 = arith.constant 0 : i32
    %c0_i32_0 = arith.constant 0 : i32
    return %c0_i32, %arg0 : i32, i32
  }
  func.func @transform_2(%arg0: i32) -> (i32, i32, i32) {
    %c0_i32 = arith.constant 0 : i32
    %c0_i32_0 = arith.constant 0 : i32
    %c0_i32_1 = arith.constant 0 : i32
    return %c0_i32, %c0_i32_0, %arg0 : i32, i32, i32
  }
  func.func @transform_3(%arg0: i32) -> (i32, i32) {
    %c0_i32 = arith.constant 0 : i32
    %c0_i32_0 = arith.constant 0 : i32
    %c0_i32_1 = arith.constant 0 : i32
    return %c0_i32, %c0_i32_0 : i32, i32
  }
  func.func @transform_4(%arg0: i32) -> (i32, i32, i32) {
    %c0_i32 = arith.constant 0 : i32
    %c0_i32_0 = arith.constant 0 : i32
    %c0_i32_1 = arith.constant 0 : i32
    return %arg0, %c0_i32, %c0_i32_0 : i32, i32, i32
  }
}

</mosaic_0001>

<llo_original>
// kernel: set_criterion_forward.1
$region0: #{set_criterion_forward.1}
  #allocation0 [shape = 'u32[]', space=smem, size = 0x4, offset = 0x4, fixed_abs, tag = 'smem constant byte address 0x4 - core index']
  #allocation1 [shape = 'u32[144,128]{1,0:T(1,128)}', space=vmem, size = 0x12000, scoped, tag = 'internal scratch']
  %s0 = inlined_call_operand.vmem [shape: f32[2,256,20], index: 0, kind: input, shape index: {}]
  %s1 = inlined_call_operand.vmem [shape: s32[2,256], index: 1, kind: input, shape index: {}]
  %s2 = inlined_call_operand.vmem [shape: f32[2,8,256], index: 2, kind: input, shape index: {}]
  %s3 = inlined_call_operand.vmem [shape: f32[2,4], index: 3, kind: input, shape index: {}]
  %s4 = inlined_call_operand.vmem [shape: f32[2,8,128], index: 4, kind: output, shape index: {}]
  %s5 = sld [smem:[#allocation0]]
  $region125: #{set_criterion_forward.1} parent=0
    _
  %s7 = ssub.s32 1, %s5
  %s8 = scalar_select 0, %s7, %s5
  $region1: #{set_criterion_forward.1} parent=0
    #allocation2 [shape = 'u8[262144]{0}', space=vmem, size = 0x40000, scoped, tag = 'input window, operand 0']
    #allocation3 [shape = 'u8[16384]{0}', space=vmem, size = 0x4000, scoped, tag = 'input window, operand 2']
    loop: start=0, step=1, limit=4
    $region2: #{set_criterion_forward.1} parent=1 // loop_pre_header
      _
    $region3: #{set_criterion_forward.1} parent=1 // loop_header
      %s10 = sphi 0, %s14
      %p11 = scmp.ge.s32.totalorder %s10, 4
      %s20 = sphi 0, %s22
      %s23 = sphi 0, %s20
      %s24 = sphi 0, %s23
      %s40 = sphi 0, %s24
      %s46 = sphi 0, %s48
      %s49 = sphi 0, %s46
      %s50 = sphi 0, %s49
      %s66 = sphi 0, %s50
      %s72 = sphi 0, %s74
      %s75 = sphi 0, %s72
      %s76 = sphi 0, %s75
      %s92 = sphi 0, %s76
      %s96 = sphi 0, %s96
      %s98 = sphi 0, %s96
      %s99 = sphi 0, %s98
      %s113 = sphi 0, %s99
      %s119 = sphi 0, %s121
      %s122 = sphi 0, %s119
      %s123 = sphi 0, %s122
      %s139 = sphi 0, %s123
    $region4: #{set_criterion_forward.1} parent=1 // loop_header_branch
      %13 = sbr.rel (%p11) target = $region8
    $region5: #{set_criterion_forward.1} parent=1 // loop_body
      %s15 = ssub.s32 %s10, 1
      %s16 = ssub.s32 %s10, 2
      %s17 = sadd.s32 %s10, 1
      %s18 = ssub.s32 %s10, %s17
      %p19 = scmp.eq.s32.totalorder %s18, 0
      %s21 = sadd.s32 %s20, 1
      %s22 = scalar_select %p19, %s20, %s21
      %p25 = pneg %p19
      %p26 = scmp.eq.s32.totalorder %s10, 1
      %p27 = por %p25, %p26
      %p28 = scmp.ne.s32.totalorder %s20, %s23
      %p29 = scmp.eq.s32.totalorder %s10, 0
      %p30 = por %p28, %p29
      %p31 = scmp.ne.s32.totalorder %s20, %s23
      %p32 = scmp.eq.s32.totalorder %s15, 1
      %p33 = por %p31, %p32
      %p34 = scmp.ne.s32.totalorder %s23, %s24
      %p35 = scmp.eq.s32.totalorder %s15, 0
      %p36 = por %p34, %p35
      %p37 = scmp.ne.s32.totalorder %s23, %s24
      %p38 = scmp.eq.s32.totalorder %s16, 1
      %p39 = por %p37, %p38
      %p41 = scmp.ne.s32.totalorder %s24, %s40
      %p42 = scmp.eq.s32.totalorder %s16, 0
      %p43 = por %p41, %p42
      %s44 = ssub.s32 %s10, %s17
      %p45 = scmp.eq.s32.totalorder %s44, 0
      %s47 = sadd.s32 %s46, 1
      %s48 = scalar_select %p45, %s46, %s47
      %p51 = pneg %p45
      %p52 = scmp.eq.s32.totalorder %s10, 1
      %p53 = por %p51, %p52
      %p54 = scmp.ne.s32.totalorder %s46, %s49
      %p55 = scmp.eq.s32.totalorder %s10, 0
      %p56 = por %p54, %p55
      %p57 = scmp.ne.s32.totalorder %s46, %s49
      %p58 = scmp.eq.s32.totalorder %s15, 1
      %p59 = por %p57, %p58
      %p60 = scmp.ne.s32.totalorder %s49, %s50
      %p61 = scmp.eq.s32.totalorder %s15, 0
      %p62 = por %p60, %p61
      %p63 = scmp.ne.s32.totalorder %s49, %s50
      %p64 = scmp.eq.s32.totalorder %s16, 1
      %p65 = por %p63, %p64
      %p67 = scmp.ne.s32.totalorder %s50, %s66
      %p68 = scmp.eq.s32.totalorder %s16, 0
      %p69 = por %p67, %p68
      %s70 = ssub.s32 %s10, %s17
      %p71 = scmp.eq.s32.totalorder %s70, 0
      %s73 = sadd.s32 %s72, 1
      %s74 = scalar_select %p71, %s72, %s73
      %p77 = pneg %p71
      %p78 = scmp.eq.s32.totalorder %s10, 1
      %p79 = por %p77, %p78
      %p80 = scmp.ne.s32.totalorder %s72, %s75
      %p81 = scmp.eq.s32.totalorder %s10, 0
      %p82 = por %p80, %p81
      %p83 = scmp.ne.s32.totalorder %s72, %s75
      %p84 = scmp.eq.s32.totalorder %s15, 1
      %p85 = por %p83, %p84
      %p86 = scmp.ne.s32.totalorder %s75, %s76
      %p87 = scmp.eq.s32.totalorder %s15, 0
      %p88 = por %p86, %p87
      %p89 = scmp.ne.s32.totalorder %s75, %s76
      %p90 = scmp.eq.s32.totalorder %s16, 1
      %p91 = por %p89, %p90
      %p93 = scmp.ne.s32.totalorder %s76, %s92
      %p94 = scmp.eq.s32.totalorder %s16, 0
      %p95 = por %p93, %p94
      %s97 = sadd.s32 %s96, 1
      %p100 = scmp.eq.s32.totalorder %s10, 1
      %p101 = scmp.ne.s32.totalorder %s96, %s98
      %p102 = scmp.eq.s32.totalorder %s10, 0
      %p103 = por %p101, %p102
      %p104 = scmp.ne.s32.totalorder %s96, %s98
      %p105 = scmp.eq.s32.totalorder %s15, 1
      %p106 = por %p104, %p105
      %p107 = scmp.ne.s32.totalorder %s98, %s99
      %p108 = scmp.eq.s32.totalorder %s15, 0
      %p109 = por %p107, %p108
      %p110 = scmp.ne.s32.totalorder %s98, %s99
      %p111 = scmp.eq.s32.totalorder %s16, 1
      %p112 = por %p110, %p111
      %p114 = scmp.ne.s32.totalorder %s99, %s113
      %p115 = scmp.eq.s32.totalorder %s16, 0
      %p116 = por %p114, %p115
      %s117 = ssub.s32 %s10, %s17
      %p118 = scmp.eq.s32.totalorder %s117, 0
      %s120 = sadd.s32 %s119, 1
      %s121 = scalar_select %p118, %s119, %s120
      %p124 = pneg %p118
      %p125 = scmp.eq.s32.totalorder %s10, 1
      %p126 = por %p124, %p125
      %p127 = scmp.ne.s32.totalorder %s119, %s122
      %p128 = scmp.eq.s32.totalorder %s10, 0
      %p129 = por %p127, %p128
      %p130 = scmp.ne.s32.totalorder %s119, %s122
      %p131 = scmp.eq.s32.totalorder %s15, 1
      %p132 = por %p130, %p131
      %p133 = scmp.ne.s32.totalorder %s122, %s123
      %p134 = scmp.eq.s32.totalorder %s15, 0
      %p135 = por %p133, %p134
      %p136 = scmp.ne.s32.totalorder %s122, %s123
      %p137 = scmp.eq.s32.totalorder %s16, 1
      %p138 = por %p136, %p137
      %p140 = scmp.ne.s32.totalorder %s123, %s139
      %p141 = scmp.eq.s32.totalorder %s16, 0
      %p142 = por %p140, %p141
      %p143 = scmp.le.s32.totalorder 1, %s10
      %p144 = scmp.lt.s32.totalorder %s10, 3
      %p145 = pnand %p143, %p144
      %p146 = pneg %p145
      // Predicated region
      $region9: #{set_criterion_forward.1} parent=5 // pred_check
        _
      $region10: #{set_criterion_forward.1} parent=5 // pred_check_branch
        %148 = sbr.rel (%p145) target = $region12
      $region11: #{set_criterion_forward.1} parent=5 // pred_region
        %s149 = ssub.s32 %s10, 1
        // Predicated region
        $region13: #{set_criterion_forward.1} parent=11 // pred_check
          %p150 = pneg %p109
        $region14: #{set_criterion_forward.1} parent=11 // pred_check_branch
          %152 = sbr.rel (%p150) target = $region16
        $region15: #{set_criterion_forward.1} parent=11 // pred_region
          _
        $region16: #{set_criterion_forward.1} parent=11 // pred_fallthru
          _
      $region12: #{set_criterion_forward.1} parent=5 // pred_fallthru
        _
      %p153 = scmp.lt.s32.totalorder %s10, 2
      // Predicated region
      $region17: #{set_criterion_forward.1} parent=5 // pred_check
        %p154 = pneg %p153
      $region18: #{set_criterion_forward.1} parent=5 // pred_check_branch
        %156 = sbr.rel (%p154) target = $region20
      $region19: #{set_criterion_forward.1} parent=5 // pred_region
        // Predicated region
        $region21: #{set_criterion_forward.1} parent=19 // pred_check
          %p157 = pneg %p30
        $region22: #{set_criterion_forward.1} parent=19 // pred_check_branch
          %159 = sbr.rel (%p157) target = $region24
        $region23: #{set_criterion_forward.1} parent=19 // pred_region
          %s160 = sand.u32 %s20, 1
          %s161 = sand.u32 %s20, 1
          %s162 = smul.addr %s161, 256
          %s163 = scalar_lea.vmem [#allocation2], %s162
          %s164 = smul.u32 16, %s10
          %s165 = smul.addr %s164, 8
          %s166 = scalar_lea.vmem %s0, %s165
          // Predicated region
          $region25: #{set_criterion_forward.1} parent=23 // pred_check
            _
          $region26: #{set_criterion_forward.1} parent=23 // pred_check_branch
            %168 = sbr.rel (0) target = $region28
          $region27: #{set_criterion_forward.1} parent=23 // pred_region
            // Predicated region
            $region29: #{set_criterion_forward.1} parent=27 // pred_check
              _
            $region30: #{set_criterion_forward.1} parent=27 // pred_check_branch
              %170 = sbr.rel (0) target = $region32
            $region31: #{set_criterion_forward.1} parent=27 // pred_region
              // Predicated region
              $region44: #{set_criterion_forward.1} parent=31 // pred_check
                _
              $region45: #{set_criterion_forward.1} parent=31 // pred_check_branch
                %247 = sbr.rel (0) target = $region47
              $region46: #{set_criterion_forward.1} parent=31 // pred_region
                loop: start=0, step=1, limit=1
                $region48: #{set_criterion_forward.1} parent=46 // loop_pre_header
                  _
                $region49: #{set_criterion_forward.1} parent=46 // loop_header
                  %s249 = sphi 0, %s253
                  %p250 = scmp.ge.s32.totalorder %s249, 1
                  %s254 = sphi %s166, %s166
                  %s255 = sphi %s163, %s163
                $region50: #{set_criterion_forward.1} parent=46 // loop_header_branch
                  %252 = sbr.rel (%p250) target = $region54
                $region51: #{set_criterion_forward.1} parent=46 // loop_body
                  %v256 = vld [vmem:[%s254] sm:$0xff]
                  %257 = vst [vmem:[%s255] sm:$0xff] %v256
                  %v258 = vld [vmem:[%s254 + $0x8] sm:$0xff]
                  %259 = vst [vmem:[%s255 + $0x8] sm:$0xff] %v258
                  %v260 = vld [vmem:[%s254 + $0x10] sm:$0xff]
                  %261 = vst [vmem:[%s255 + $0x10] sm:$0xff] %v260
                  %v262 = vld [vmem:[%s254 + $0x18] sm:$0xff]
                  %263 = vst [vmem:[%s255 + $0x18] sm:$0xff] %v262
                  %v264 = vld [vmem:[%s254 + $0x20] sm:$0xff]
                  %265 = vst [vmem:[%s255 + $0x20] sm:$0xff] %v264
                  %v266 = vld [vmem:[%s254 + $0x28] sm:$0xff]
                  %267 = vst [vmem:[%s255 + $0x28] sm:$0xff] %v266
                  %v268 = vld [vmem:[%s254 + $0x30] sm:$0xff]
                  %269 = vst [vmem:[%s255 + $0x30] sm:$0xff] %v268
                  %v270 = vld [vmem:[%s254 + $0x38] sm:$0xff]
                  %271 = vst [vmem:[%s255 + $0x38] sm:$0xff] %v270
                  %v272 = vld [vmem:[%s254 + $0x40] sm:$0xff]
                  %273 = vst [vmem:[%s255 + $0x40] sm:$0xff] %v272
                  %v274 = vld [vmem:[%s254 + $0x48] sm:$0xff]
                  %275 = vst [vmem:[%s255 + $0x48] sm:$0xff] %v274
                  %v276 = vld [vmem:[%s254 + $0x50] sm:$0xff]
                  %277 = vst [vmem:[%s255 + $0x50] sm:$0xff] %v276
                  %v278 = vld [vmem:[%s254 + $0x58] sm:$0xff]
                  %279 = vst [vmem:[%s255 + $0x58] sm:$0xff] %v278
                  %v280 = vld [vmem:[%s254 + $0x60] sm:$0xff]
                  %281 = vst [vmem:[%s255 + $0x60] sm:$0xff] %v280
                  %v282 = vld [vmem:[%s254 + $0x68] sm:$0xff]
                  %283 = vst [vmem:[%s255 + $0x68] sm:$0xff] %v282
                  %v284 = vld [vmem:[%s254 + $0x70] sm:$0xff]
                  %285 = vst [vmem:[%s255 + $0x70] sm:$0xff] %v284
                  %v286 = vld [vmem:[%s254 + $0x78] sm:$0xff]
                  %287 = vst [vmem:[%s255 + $0x78] sm:$0xff] %v286
                  %v288 = vld [vmem:[%s254 + $0x100] sm:$0xff]
                  %289 = vst [vmem:[%s255 + $0x80] sm:$0xff] %v288
                  %v290 = vld [vmem:[%s254 + $0x108] sm:$0xff]
                  %291 = vst [vmem:[%s255 + $0x88] sm:$0xff] %v290
                  %v292 = vld [vmem:[%s254 + $0x110] sm:$0xff]
                  %293 = vst [vmem:[%s255 + $0x90] sm:$0xff] %v292
                  %v294 = vld [vmem:[%s254 + $0x118] sm:$0xff]
                  %295 = vst [vmem:[%s255 + $0x98] sm:$0xff] %v294
                  %v296 = vld [vmem:[%s254 + $0x120] sm:$0xff]
                  %297 = vst [vmem:[%s255 + $0xa0] sm:$0xff] %v296
                  %v298 = vld [vmem:[%s254 + $0x128] sm:$0xff]
                  %299 = vst [vmem:[%s255 + $0xa8] sm:$0xff] %v298
                  %v300 = vld [vmem:[%s254 + $0x130] sm:$0xff]
                  %301 = vst [vmem:[%s255 + $0xb0] sm:$0xff] %v300
                  %v302 = vld [vmem:[%s254 + $0x138] sm:$0xff]
                  %303 = vst [vmem:[%s255 + $0xb8] sm:$0xff] %v302
                  %v304 = vld [vmem:[%s254 + $0x140] sm:$0xff]
                  %305 = vst [vmem:[%s255 + $0xc0] sm:$0xff] %v304
                  %v306 = vld [vmem:[%s254 + $0x148] sm:$0xff]
                  %307 = vst [vmem:[%s255 + $0xc8] sm:$0xff] %v306
                  %v308 = vld [vmem:[%s254 + $0x150] sm:$0xff]
                  %309 = vst [vmem:[%s255 + $0xd0] sm:$0xff] %v308
                  %v310 = vld [vmem:[%s254 + $0x158] sm:$0xff]
                  %311 = vst [vmem:[%s255 + $0xd8] sm:$0xff] %v310
                  %v312 = vld [vmem:[%s254 + $0x160] sm:$0xff]
                  %313 = vst [vmem:[%s255 + $0xe0] sm:$0xff] %v312
                  %v314 = vld [vmem:[%s254 + $0x168] sm:$0xff]
                  %315 = vst [vmem:[%s255 + $0xe8] sm:$0xff] %v314
                  %v316 = vld [vmem:[%s254 + $0x170] sm:$0xff]
                  %317 = vst [vmem:[%s255 + $0xf0] sm:$0xff] %v316
                  %v318 = vld [vmem:[%s254 + $0x178] sm:$0xff]
                  %319 = vst [vmem:[%s255 + $0xf8] sm:$0xff] %v318
                $region52: #{set_criterion_forward.1} parent=46 // loop_footer
                  %s253 = sadd.s32 1, %s249
                $region53: #{set_criterion_forward.1} parent=46 // loop_footer_branch
                  %248 = sbr.rel target = $region49
                $region54: #{set_criterion_forward.1} parent=46 // loop_exit
                  _
              $region47: #{set_criterion_forward.1} parent=31 // pred_fallthru
                _
              // Predicated region
              $region55: #{set_criterion_forward.1} parent=31 // pred_check
                _
              $region56: #{set_criterion_forward.1} parent=31 // pred_check_branch
                %321 = sbr.rel target = $region58
              $region57: #{set_criterion_forward.1} parent=31 // pred_region
                _
              $region58: #{set_criterion_forward.1} parent=31 // pred_fallthru
                _
            $region32: #{set_criterion_forward.1} parent=27 // pred_fallthru
              _
            // Predicated region
            $region33: #{set_criterion_forward.1} parent=27 // pred_check
              _
            $region34: #{set_criterion_forward.1} parent=27 // pred_check_branch
              %172 = sbr.rel target = $region36
            $region35: #{set_criterion_forward.1} parent=27 // pred_region
              loop: start=0, step=1, limit=1
              $region37: #{set_criterion_forward.1} parent=35 // loop_pre_header
                _
              $region38: #{set_criterion_forward.1} parent=35 // loop_header
                %s175 = sphi 0, %s179
                %p176 = scmp.ge.s32.totalorder %s175, 1
                %s180 = sphi %s166, %s166
                %s181 = sphi %s163, %s163
              $region39: #{set_criterion_forward.1} parent=35 // loop_header_branch
                %178 = sbr.rel (%p176) target = $region43
              $region40: #{set_criterion_forward.1} parent=35 // loop_body
                %v182 = vld [vmem:[%s180] sm:$0xff]
                %183 = vst [vmem:[%s181] sm:$0xff] %v182
                %v184 = vld [vmem:[%s180 + $0x8] sm:$0xff]
                %185 = vst [vmem:[%s181 + $0x8] sm:$0xff] %v184
                %v186 = vld [vmem:[%s180 + $0x10] sm:$0xff]
                %187 = vst [vmem:[%s181 + $0x10] sm:$0xff] %v186
                %v188 = vld [vmem:[%s180 + $0x18] sm:$0xff]
                %189 = vst [vmem:[%s181 + $0x18] sm:$0xff] %v188
                %v190 = vld [vmem:[%s180 + $0x20] sm:$0xff]
                %191 = vst [vmem:[%s181 + $0x20] sm:$0xff] %v190
                %v192 = vld [vmem:[%s180 + $0x28] sm:$0xff]
                %193 = vst [vmem:[%s181 + $0x28] sm:$0xff] %v192
                %v194 = vld [vmem:[%s180 + $0x30] sm:$0xff]
                %195 = vst [vmem:[%s181 + $0x30] sm:$0xff] %v194
                %v196 = vld [vmem:[%s180 + $0x38] sm:$0xff]
                %197 = vst [vmem:[%s181 + $0x38] sm:$0xff] %v196
                %v198 = vld [vmem:[%s180 + $0x40] sm:$0xff]
                %199 = vst [vmem:[%s181 + $0x40] sm:$0xff] %v198
                %v200 = vld [vmem:[%s180 + $0x48] sm:$0xff]
                %201 = vst [vmem:[%s181 + $0x48] sm:$0xff] %v200
                %v202 = vld [vmem:[%s180 + $0x50] sm:$0xff]
                %203 = vst [vmem:[%s181 + $0x50] sm:$0xff] %v202
                %v204 = vld [vmem:[%s180 + $0x58] sm:$0xff]
                %205 = vst [vmem:[%s181 + $0x58] sm:$0xff] %v204
                %v206 = vld [vmem:[%s180 + $0x60] sm:$0xff]
                %207 = vst [vmem:[%s181 + $0x60] sm:$0xff] %v206
                %v208 = vld [vmem:[%s180 + $0x68] sm:$0xff]
                %209 = vst [vmem:[%s181 + $0x68] sm:$0xff] %v208
                %v210 = vld [vmem:[%s180 + $0x70] sm:$0xff]
                %211 = vst [vmem:[%s181 + $0x70] sm:$0xff] %v210
                %v212 = vld [vmem:[%s180 + $0x78] sm:$0xff]
                %213 = vst [vmem:[%s181 + $0x78] sm:$0xff] %v212
                %v214 = vld [vmem:[%s180 + $0x100] sm:$0xff]
                %215 = vst [vmem:[%s181 + $0x80] sm:$0xff] %v214
                %v216 = vld [vmem:[%s180 + $0x108] sm:$0xff]
                %217 = vst [vmem:[%s181 + $0x88] sm:$0xff] %v216
                %v218 = vld [vmem:[%s180 + $0x110] sm:$0xff]
                %219 = vst [vmem:[%s181 + $0x90] sm:$0xff] %v218
                %v220 = vld [vmem:[%s180 + $0x118] sm:$0xff]
                %221 = vst [vmem:[%s181 + $0x98] sm:$0xff] %v220
                %v222 = vld [vmem:[%s180 + $0x120] sm:$0xff]
                %223 = vst [vmem:[%s181 + $0xa0] sm:$0xff] %v222
                %v224 = vld [vmem:[%s180 + $0x128] sm:$0xff]
                %225 = vst [vmem:[%s181 + $0xa8] sm:$0xff] %v224
                %v226 = vld [vmem:[%s180 + $0x130] sm:$0xff]
                %227 = vst [vmem:[%s181 + $0xb0] sm:$0xff] %v226
                %v228 = vld [vmem:[%s180 + $0x138] sm:$0xff]
                %229 = vst [vmem:[%s181 + $0xb8] sm:$0xff] %v228
                %v230 = vld [vmem:[%s180 + $0x140] sm:$0xff]
                %231 = vst [vmem:[%s181 + $0xc0] sm:$0xff] %v230
                %v232 = vld [vmem:[%s180 + $0x148] sm:$0xff]
                %233 = vst [vmem:[%s181 + $0xc8] sm:$0xff] %v232
                %v234 = vld [vmem:[%s180 + $0x150] sm:$0xff]
                %235 = vst [vmem:[%s181 + $0xd0] sm:$0xff] %v234
                %v236 = vld [vmem:[%s180 + $0x158] sm:$0xff]
                %237 = vst [vmem:[%s181 + $0xd8] sm:$0xff] %v236
                %v238 = vld [vmem:[%s180 + $0x160] sm:$0xff]
                %239 = vst [vmem:[%s181 + $0xe0] sm:$0xff] %v238
                %v240 = vld [vmem:[%s180 + $0x168] sm:$0xff]
                %241 = vst [vmem:[%s181 + $0xe8] sm:$0xff] %v240
                %v242 = vld [vmem:[%s180 + $0x170] sm:$0xff]
                %243 = vst [vmem:[%s181 + $0xf0] sm:$0xff] %v242
                %v244 = vld [vmem:[%s180 + $0x178] sm:$0xff]
                %245 = vst [vmem:[%s181 + $0xf8] sm:$0xff] %v244
              $region41: #{set_criterion_forward.1} parent=35 // loop_footer
                %s179 = sadd.s32 1, %s175
              $region42: #{set_criterion_forward.1} parent=35 // loop_footer_branch
                %174 = sbr.rel target = $region38
              $region43: #{set_criterion_forward.1} parent=35 // loop_exit
                _
            $region36: #{set_criterion_forward.1} parent=27 // pred_fallthru
              _
          $region28: #{set_criterion_forward.1} parent=23 // pred_fallthru
            _
          %322 = vnop
        $region24: #{set_criterion_forward.1} parent=19 // pred_fallthru
          _
        // Predicated region
        $region59: #{set_criterion_forward.1} parent=19 // pred_check
          %p323 = pneg %p56
        $region60: #{set_criterion_forward.1} parent=19 // pred_check_branch
          %325 = sbr.rel (%p323) target = $region62
        $region61: #{set_criterion_forward.1} parent=19 // pred_region
          %p326 = scmp.lt.s32.totalorder %s10, 1
          %s327 = scalar_select %p326, %s10, 1
          %s328 = smul.addr %s327, 2
          %s329 = scalar_lea.vmem %s1, %s328
        $region62: #{set_criterion_forward.1} parent=19 // pred_fallthru
          _
        // Predicated region
        $region63: #{set_criterion_forward.1} parent=19 // pred_check
          %p330 = pneg %p82
        $region64: #{set_criterion_forward.1} parent=19 // pred_check_branch
          %332 = sbr.rel (%p330) target = $region66
        $region65: #{set_criterion_forward.1} parent=19 // pred_region
          %s333 = sand.u32 %s72, 1
          %s334 = sand.u32 %s72, 1
          %s335 = smul.addr %s334, 16
          %s336 = scalar_lea.vmem [#allocation3], %s335
          %s337 = smul.addr %s10, 8
          %s338 = scalar_lea.vmem %s2, %s337
          // Predicated region
          $region67: #{set_criterion_forward.1} parent=65 // pred_check
            _
          $region68: #{set_criterion_forward.1} parent=65 // pred_check_branch
            %340 = sbr.rel (0) target = $region70
          $region69: #{set_criterion_forward.1} parent=65 // pred_region
            // Predicated region
            $region71: #{set_criterion_forward.1} parent=69 // pred_check
              _
            $region72: #{set_criterion_forward.1} parent=69 // pred_check_branch
              %342 = sbr.rel (0) target = $region74
            $region73: #{set_criterion_forward.1} parent=69 // pred_region
              // Predicated region
              $region86: #{set_criterion_forward.1} parent=73 // pred_check
                _
              $region87: #{set_criterion_forward.1} parent=73 // pred_check_branch
                %359 = sbr.rel (0) target = $region89
              $region88: #{set_criterion_forward.1} parent=73 // pred_region
                loop: start=0, step=1, limit=1
                $region90: #{set_criterion_forward.1} parent=88 // loop_pre_header
                  _
                $region91: #{set_criterion_forward.1} parent=88 // loop_header
                  %s361 = sphi 0, %s365
                  %p362 = scmp.ge.s32.totalorder %s361, 1
                  %s366 = sphi %s338, %s338
                  %s367 = sphi %s336, %s336
                $region92: #{set_criterion_forward.1} parent=88 // loop_header_branch
                  %364 = sbr.rel (%p362) target = $region96
                $region93: #{set_criterion_forward.1} parent=88 // loop_body
                  %v368 = vld [vmem:[%s366] sm:$0xff]
                  %369 = vst [vmem:[%s367] sm:$0xff] %v368
                  %v370 = vld [vmem:[%s366 + $0x10] sm:$0xff]
                  %371 = vst [vmem:[%s367 + $0x8] sm:$0xff] %v370
                $region94: #{set_criterion_forward.1} parent=88 // loop_footer
                  %s365 = sadd.s32 1, %s361
                $region95: #{set_criterion_forward.1} parent=88 // loop_footer_branch
                  %360 = sbr.rel target = $region91
                $region96: #{set_criterion_forward.1} parent=88 // loop_exit
                  _
              $region89: #{set_criterion_forward.1} parent=73 // pred_fallthru
                _
              // Predicated region
              $region97: #{set_criterion_forward.1} parent=73 // pred_check
                _
              $region98: #{set_criterion_forward.1} parent=73 // pred_check_branch
                %373 = sbr.rel target = $region100
              $region99: #{set_criterion_forward.1} parent=73 // pred_region
                _
              $region100: #{set_criterion_forward.1} parent=73 // pred_fallthru
                _
            $region74: #{set_criterion_forward.1} parent=69 // pred_fallthru
              _
            // Predicated region
            $region75: #{set_criterion_forward.1} parent=69 // pred_check
              _
            $region76: #{set_criterion_forward.1} parent=69 // pred_check_branch
              %344 = sbr.rel target = $region78
            $region77: #{set_criterion_forward.1} parent=69 // pred_region
              loop: start=0, step=1, limit=1
              $region79: #{set_criterion_forward.1} parent=77 // loop_pre_header
                _
              $region80: #{set_criterion_forward.1} parent=77 // loop_header
                %s347 = sphi 0, %s351
                %p348 = scmp.ge.s32.totalorder %s347, 1
                %s352 = sphi %s338, %s338
                %s353 = sphi %s336, %s336
              $region81: #{set_criterion_forward.1} parent=77 // loop_header_branch
                %350 = sbr.rel (%p348) target = $region85
              $region82: #{set_criterion_forward.1} parent=77 // loop_body
                %v354 = vld [vmem:[%s352] sm:$0xff]
                %355 = vst [vmem:[%s353] sm:$0xff] %v354
                %v356 = vld [vmem:[%s352 + $0x10] sm:$0xff]
                %357 = vst [vmem:[%s353 + $0x8] sm:$0xff] %v356
              $region83: #{set_criterion_forward.1} parent=77 // loop_footer
                %s351 = sadd.s32 1, %s347
              $region84: #{set_criterion_forward.1} parent=77 // loop_footer_branch
                %346 = sbr.rel target = $region80
              $region85: #{set_criterion_forward.1} parent=77 // loop_exit
                _
            $region78: #{set_criterion_forward.1} parent=69 // pred_fallthru
              _
          $region70: #{set_criterion_forward.1} parent=65 // pred_fallthru
            _
          %374 = vnop
        $region66: #{set_criterion_forward.1} parent=19 // pred_fallthru
          _
      $region20: #{set_criterion_forward.1} parent=5 // pred_fallthru
        _
      %p375 = scmp.le.s32.totalorder 1, %s10
      %p376 = scmp.lt.s32.totalorder %s10, 3
      %p377 = pnand %p375, %p376
      %p378 = pneg %p377
      // Predicated region
      $region101: #{set_criterion_forward.1} parent=5 // pred_check
        _
      $region102: #{set_criterion_forward.1} parent=5 // pred_check_branch
        %380 = sbr.rel (%p377) target = $region104
      $region103: #{set_criterion_forward.1} parent=5 // pred_region
        %s381 = ssub.s32 %s10, 1
        %s382 = sand.u32 %s23, 1
        %s383 = sand.u32 %s23, 1
        %s384 = smul.addr %s383, 256
        %s385 = scalar_lea.vmem [#allocation2], %s384
        // Predicated region
        $region105: #{set_criterion_forward.1} parent=103 // pred_check
          %p386 = pneg %p36
        $region106: #{set_criterion_forward.1} parent=103 // pred_check_branch
          %388 = sbr.rel (%p386) target = $region108
        $region107: #{set_criterion_forward.1} parent=103 // pred_region
          _
        $region108: #{set_criterion_forward.1} parent=103 // pred_fallthru
          _
        %s389 = sand.u32 %s75, 1
        %s390 = sand.u32 %s75, 1
        %s391 = smul.addr %s390, 16
        %s392 = scalar_lea.vmem [#allocation3], %s391
        // Predicated region
        $region109: #{set_criterion_forward.1} parent=103 // pred_check
          %p393 = pneg %p88
        $region110: #{set_criterion_forward.1} parent=103 // pred_check_branch
          %395 = sbr.rel (%p393) target = $region112
        $region111: #{set_criterion_forward.1} parent=103 // pred_region
          _
        $region112: #{set_criterion_forward.1} parent=103 // pred_fallthru
          _
        %s396 = sand.u32 %s23, 1
        %s397 = sand.u32 %s23, 1
        %s398 = smul.addr %s397, 256
        %s399 = scalar_lea.vmem [#allocation2], %s398
        %p400 = pneg %p36
        %p401 = pneg %p33
        %p402 = scmp.lt.s32.totalorder %s15, 1
        %s403 = scalar_select %p402, %s15, 1
        %s404 = smul.addr %s403, 2
        %s405 = scalar_lea.vmem %s1, %s404
        %p406 = pneg %p62
        %p407 = pneg %p59
        %s408 = sand.u32 %s75, 1
        %s409 = sand.u32 %s75, 1
        %s410 = smul.addr %s409, 16
        %s411 = scalar_lea.vmem [#allocation3], %s410
        %p412 = pneg %p88
        %p413 = pneg %p85
        %p414 = pneg %p109
        %p415 = pneg %p106
        %p416 = pneg %p135
        %p417 = pneg %p132
        %p418 = scmp.lt.s32.totalorder %s15, 1
        %s419 = scalar_select %p418, %s15, 1
        %s420 = smul.addr %s419, 8
        %s421 = scalar_lea.vmem %s4, %s420
        %s422 = smul.u32 16, %s15
        %p423 = scmp.lt.s32.totalorder %s15, 1
        %s424 = scalar_select %p423, %s15, 1
        %s425 = smul.addr %s424, 2
        %s426 = scalar_lea.vmem %s1, %s425
        %p427 = scmp.lt.s32.totalorder %s15, 1
        %s428 = scalar_select %p427, %s15, 1
        %s429 = smul.addr %s428, 8
        %s430 = scalar_lea.vmem %s4, %s429
        %v432 = vld [vmem:[%s426] sm:$0x3]
        %vm433 = vcmp.ne.s32.totalorder %v432, 20
        %v434 = vsel %vm433, 1, 0
        %v435 = vcvt.s32.f32 %v434
        %v436 = vlaneseq
        %v437 = vshrl.u32 %v436, 7
        %v438 = vadd.s32 %v437, 8
        %v439 = vadd.s32 %v437, 16
        %v440 = vlaneseq
        %v441 = vand.u32 %v440, 127
        %vm442 = vcmp.eq.s32.totalorder %v437, %v441
        %vm443 = vcmp.eq.s32.totalorder %v438, %v441
        %vm444 = vcmp.eq.s32.totalorder %v439, %v441
        %v445 = vsel %vm442, 1.0, 0.0
        %v446 = vsel %vm443, 1.0, 0.0
        %v447 = vsel %vm444, 1.0, 0.0
        %v448 = vpack.c.bf16 %v446, %v445
        %v449 = vpack.c.bf16 %v447, %v447
        %v450 = vld [vmem:[%s385] sm:$0xff]
        %v451 = vld [vmem:[%s385 + $0x8] sm:$0xff]
        %v452 = vld [vmem:[%s385 + $0x10] sm:$0xff]
        %v453 = vld [vmem:[%s385 + $0x18] sm:$0xff]
        %v454 = vld [vmem:[%s385 + $0x20] sm:$0xff]
        %v455 = vld [vmem:[%s385 + $0x28] sm:$0xff]
        %v456 = vld [vmem:[%s385 + $0x30] sm:$0xff]
        %v457 = vld [vmem:[%s385 + $0x38] sm:$0xff]
        %v458 = vld [vmem:[%s385 + $0x40] sm:$0xff]
        %v459 = vld [vmem:[%s385 + $0x48] sm:$0xff]
        %v460 = vld [vmem:[%s385 + $0x50] sm:$0xff]
        %v461 = vld [vmem:[%s385 + $0x58] sm:$0xff]
        %v462 = vld [vmem:[%s385 + $0x60] sm:$0xff]
        %v463 = vld [vmem:[%s385 + $0x68] sm:$0xff]
        %v464 = vld [vmem:[%s385 + $0x70] sm:$0xff]
        %v465 = vld [vmem:[%s385 + $0x78] sm:$0xff]
        %v466 = vpack.c.bf16 %v451, %v450
        %v467 = vpack.c.bf16 %v453, %v452
        %v468 = vpack.c.bf16 %v455, %v454
        %v469 = vpack.c.bf16 %v457, %v456
        %v470 = vpack.c.bf16 %v459, %v458
        %v471 = vpack.c.bf16 %v461, %v460
        %v472 = vpack.c.bf16 %v463, %v462
        %v473 = vpack.c.bf16 %v465, %v464
        %v474 = vunpack.c.l.bf16 %v466
        %v475 = vunpack.c.h.bf16 %v466
        %v476 = vunpack.c.l.bf16 %v467
        %v477 = vunpack.c.h.bf16 %v467
        %v478 = vunpack.c.l.bf16 %v468
        %v479 = vunpack.c.h.bf16 %v468
        %v480 = vunpack.c.l.bf16 %v469
        %v481 = vunpack.c.h.bf16 %v469
        %v482 = vunpack.c.l.bf16 %v470
        %v483 = vunpack.c.h.bf16 %v470
        %v484 = vunpack.c.l.bf16 %v471
        %v485 = vunpack.c.h.bf16 %v471
        %v486 = vunpack.c.l.bf16 %v472
        %v487 = vunpack.c.h.bf16 %v472
        %v488 = vunpack.c.l.bf16 %v473
        %v489 = vunpack.c.h.bf16 %v473
        %v490 = vsub.f32 %v450, %v474
        %v491 = vsub.f32 %v451, %v475
        %v492 = vsub.f32 %v452, %v476
        %v493 = vsub.f32 %v453, %v477
        %v494 = vsub.f32 %v454, %v478
        %v495 = vsub.f32 %v455, %v479
        %v496 = vsub.f32 %v456, %v480
        %v497 = vsub.f32 %v457, %v481
        %v498 = vsub.f32 %v458, %v482
        %v499 = vsub.f32 %v459, %v483
        %v500 = vsub.f32 %v460, %v484
        %v501 = vsub.f32 %v461, %v485
        %v502 = vsub.f32 %v462, %v486
        %v503 = vsub.f32 %v463, %v487
        %v504 = vsub.f32 %v464, %v488
        %v505 = vsub.f32 %v465, %v489
        %v506 = vpack.c.bf16 %v491, %v490
        %v507 = vpack.c.bf16 %v493, %v492
        %v508 = vpack.c.bf16 %v495, %v494
        %v509 = vpack.c.bf16 %v497, %v496
        %v510 = vpack.c.bf16 %v499, %v498
        %v511 = vpack.c.bf16 %v501, %v500
        %v512 = vpack.c.bf16 %v503, %v502
        %v513 = vpack.c.bf16 %v505, %v504
        %vm514 = vcmask 162816
        %v516 = vsel %vm514, %v448, 0
        %v519 = vsel %vm514, %v449, 0
        %v522 = vsel %vm514, %v506, 0
        %v525 = vsel %vm514, %v507, 0
        %v528 = vsel %vm514, %v508, 0
        %v531 = vsel %vm514, %v509, 0
        %v534 = vsel %vm514, %v510, 0
        %v537 = vsel %vm514, %v511, 0
        %v540 = vsel %vm514, %v512, 0
        %v543 = vsel %vm514, %v513, 0
        %545 = vmatprep.subr.bf16.mxu0 0
        %546 = vmatpush1.bf16.xpose.msra.mxu0 %v522
        %547 = vmatprep.subr.bf16.mxu0 0
        %548 = vmatpush1.bf16.xpose.msra.mxu0 %v525
        %549 = vmatprep.subr.bf16.mxu0 0
        %550 = vmatpush1.bf16.xpose.msra.mxu0 %v528
        %551 = vmatprep.subr.bf16.mxu0 0
        %552 = vmatpush1.bf16.xpose.msra.mxu0 %v531
        %553 = vmatprep.subr.bf16.mxu0 0
        %554 = vmatpush1.bf16.xpose.msra.mxu0 %v534
        %555 = vmatprep.subr.bf16.mxu0 0
        %556 = vmatpush1.bf16.xpose.msra.mxu0 %v537
        %557 = vmatprep.subr.bf16.mxu0 0
        %558 = vmatpush1.bf16.xpose.msra.mxu0 %v540
        %559 = vmatprep.subr.bf16.mxu0 0
        %560 = vmatpush1.bf16.xpose.msra.mxu0 %v543
        %561 = vmatprep.subr.bf16.mxu0 0
        %562 = vmatpush1.bf16.xpose.msra.mxu0 0
        %563 = vmatprep.subr.bf16.mxu0 0
        %564 = vmatpush1.bf16.xpose.msra.mxu0 0
        %565 = vmatprep.subr.bf16.mxu0 0
        %566 = vmatpush1.bf16.xpose.msra.mxu0 0
        %567 = vmatprep.subr.bf16.mxu0 0
        %568 = vmatpush1.bf16.xpose.msra.mxu0 0
        %569 = vmatprep.subr.bf16.mxu0 0
        %570 = vmatpush1.bf16.xpose.msra.mxu0 0
        %571 = vmatprep.subr.bf16.mxu0 0
        %572 = vmatpush1.bf16.xpose.msra.mxu0 0
        %573 = vmatprep.subr.bf16.mxu0 0
        %574 = vmatpush1.bf16.xpose.msra.mxu0 0
        %575 = vmatprep.subr.bf16.mxu0 0
        %576 = vmatpush1.bf16.xpose.msra.mxu0 0
        %577 = vmatprep.mubr.bf16.mxu0 0
        %578 = vmatmul.mubr.bf16.gmra.mrb[0].mxu0 %v516
        %v579 = vpop.f32.mrb[0].mxu0
        %v580 = vadd.f32 0.0, %v579
        %v581 = vpop.f32.mrb[0].mxu0
        %v582 = vpop.f32.mrb[0].mxu0
        %v583 = vadd.f32 0.0, %v582
        %v584 = vpop.f32.mrb[0].mxu0
        %585 = vmatprep.mubr.bf16.mxu0 0
        %586 = vmatmul.mubr.bf16.gmra.mrb[0].mxu0 %v519
        %v587 = vpop.f32.mrb[0].mxu0
        %v588 = vadd.f32 0.0, %v587
        %v589 = vpop.f32.mrb[0].mxu0
        %v590 = vpop.f32.mrb[0].mxu0
        %v591 = vpop.f32.mrb[0].mxu0
        %592 = vdwg.mxu0
        %v594 = vsel %vm514, %v466, 0
        %v597 = vsel %vm514, %v467, 0
        %v600 = vsel %vm514, %v468, 0
        %v603 = vsel %vm514, %v469, 0
        %v606 = vsel %vm514, %v470, 0
        %v609 = vsel %vm514, %v471, 0
        %v612 = vsel %vm514, %v472, 0
        %v615 = vsel %vm514, %v473, 0
        %617 = vmatprep.subr.bf16.mxu0 0
        %618 = vmatpush1.bf16.xpose.msra.mxu0 %v594
        %619 = vmatprep.subr.bf16.mxu0 0
        %620 = vmatpush1.bf16.xpose.msra.mxu0 %v597
        %621 = vmatprep.subr.bf16.mxu0 0
        %622 = vmatpush1.bf16.xpose.msra.mxu0 %v600
        %623 = vmatprep.subr.bf16.mxu0 0
        %624 = vmatpush1.bf16.xpose.msra.mxu0 %v603
        %625 = vmatprep.subr.bf16.mxu0 0
        %626 = vmatpush1.bf16.xpose.msra.mxu0 %v606
        %627 = vmatprep.subr.bf16.mxu0 0
        %628 = vmatpush1.bf16.xpose.msra.mxu0 %v609
        %629 = vmatprep.subr.bf16.mxu0 0
        %630 = vmatpush1.bf16.xpose.msra.mxu0 %v612
        %631 = vmatprep.subr.bf16.mxu0 0
        %632 = vmatpush1.bf16.xpose.msra.mxu0 %v615
        %633 = vmatprep.subr.bf16.mxu0 0
        %634 = vmatpush1.bf16.xpose.msra.mxu0 0
        %635 = vmatprep.subr.bf16.mxu0 0
        %636 = vmatpush1.bf16.xpose.msra.mxu0 0
        %637 = vmatprep.subr.bf16.mxu0 0
        %638 = vmatpush1.bf16.xpose.msra.mxu0 0
        %639 = vmatprep.subr.bf16.mxu0 0
        %640 = vmatpush1.bf16.xpose.msra.mxu0 0
        %641 = vmatprep.subr.bf16.mxu0 0
        %642 = vmatpush1.bf16.xpose.msra.mxu0 0
        %643 = vmatprep.subr.bf16.mxu0 0
        %644 = vmatpush1.bf16.xpose.msra.mxu0 0
        %645 = vmatprep.subr.bf16.mxu0 0
        %646 = vmatpush1.bf16.xpose.msra.mxu0 0
        %647 = vmatprep.subr.bf16.mxu0 0
        %648 = vmatpush1.bf16.xpose.msra.mxu0 0
        %649 = vmatprep.mubr.bf16.mxu0 0
        %650 = vmatmul.mubr.bf16.gmra.mrb[0].mxu0 %v516
        %v651 = vpop.f32.mrb[0].mxu0
        %v652 = vadd.f32 %v580, %v651
        %v653 = vpop.f32.mrb[0].mxu0
        %v654 = vpop.f32.mrb[0].mxu0
        %v655 = vadd.f32 %v583, %v654
        %v656 = vpop.f32.mrb[0].mxu0
        %657 = vmatprep.mubr.bf16.mxu0 0
        %658 = vmatmul.mubr.bf16.gmra.mrb[0].mxu0 %v519
        %v659 = vpop.f32.mrb[0].mxu0
        %v660 = vadd.f32 %v588, %v659
        %v661 = vpop.f32.mrb[0].mxu0
        %v662 = vpop.f32.mrb[0].mxu0
        %v663 = vpop.f32.mrb[0].mxu0
        %664 = vdwg.mxu0
        %v665 = vlaneseq
        %v666 = vshrl.u32 %v665, 7
        %v667 = vsub.s32 0, %v666
        %v668 = vrot.slane %v432, %v667
        %vm669 = vcmp.eq.s32.totalorder %v437, %v668
        %vm670 = vcmp.eq.s32.totalorder %v438, %v668
        %vm671 = vcmp.eq.s32.totalorder %v439, %v668
        %v672 = vand.u32 2147483647, %v652
        %v673 = vand.u32 2147483647, %v655
        %v674 = vand.u32 2147483647, %v660
        %v675 = vsub.f32 0.0, %v672
        %v676 = vsub.f32 0.0, %v673
        %v677 = vsub.f32 0.0, %v674
        %v678 = vmul.f32 %v675, 1.442695
        %v679 = vpow.pop %v678
        %v680 = vmul.f32 %v676, 1.442695
        %v681 = vpow.pop %v680
        %v682 = vmul.f32 %v677, 1.442695
        %v683 = vpow.pop %v682
        %v684 = vadd.f32 %v679, 1.0
        %v685 = vadd.f32 %v681, 1.0
        %v686 = vadd.f32 %v683, 1.0
        %v687 = vlog2.pop %v684
        %v688 = vmul.f32 %v687, 0.6931472
        %v689 = vlog2.pop %v685
        %v690 = vmul.f32 %v689, 0.6931472
        %v691 = vlog2.pop %v686
        %v692 = vmul.f32 %v691, 0.6931472
        %v693 = vsub.f32 0.0, %v652
        %v694 = vsub.f32 0.0, %v655
        %v695 = vsub.f32 0.0, %v660
        %v696 = vsel %vm669, %v652, %v693
        %v697 = vsel %vm670, %v655, %v694
        %v698 = vsel %vm671, %v660, %v695
        %v699 = vsub.f32 0.0, %v696
        %v700 = vsub.f32 0.0, %v697
        %v701 = vsub.f32 0.0, %v698
        %v702 = vmax.f32 %v699, 0.0
        %v703 = vmax.f32 %v700, 0.0
        %v704 = vmax.f32 %v701, 0.0
        %v705 = vadd.f32 %v702, %v688
        %v706 = vadd.f32 %v703, %v690
        %v707 = vadd.f32 %v704, %v692
        %v708 = vsub.f32 0.0, %v705
        %v709 = vsub.f32 0.0, %v706
        %v710 = vsub.f32 0.0, %v707
        %v711 = vmul.f32 %v708, 1.442695
        %v712 = vpow.pop %v711
        %v713 = vmul.f32 %v709, 1.442695
        %v714 = vpow.pop %v713
        %v715 = vmul.f32 %v710, 1.442695
        %v716 = vpow.pop %v715
        %v717 = vsub.f32 1.0, %v712
        %v718 = vsub.f32 1.0, %v714
        %v719 = vsub.f32 1.0, %v716
        %v720 = vmul.f32 %v717, %v717
        %v721 = vmul.f32 %v718, %v718
        %v722 = vmul.f32 %v719, %v719
        %v723 = vsel %vm669, 0.25, 0.75
        %v724 = vsel %vm670, 0.25, 0.75
        %v725 = vsel %vm671, 0.25, 0.75
        %v726 = vmul.f32 %v723, %v720
        %v727 = vmul.f32 %v724, %v721
        %v728 = vmul.f32 %v725, %v722
        %v729 = vmul.f32 %v726, %v705
        %v730 = vmul.f32 %v727, %v706
        %v731 = vmul.f32 %v728, %v707
        %v732 = vadd.f32 %v729, %v730
        %vm733 = vcmask 1043456
        %v734 = vsel %vm733, %v731, 0.0
        %v735 = vadd.f32 %v732, %v734
        %v736 = vrot.slane %v735, 4
        %v737 = vadd.f32 %v735, %v736
        %v738 = vrot.slane %v737, 2
        %v739 = vadd.f32 %v737, %v738
        %v740 = vrot.slane %v739, 1
        %v741 = vadd.f32 %v739, %v740
        %v742 = vadd.f32 %v741, 0.0
        %s743 = scalar_lea.vmem %s385, 128 [#allocation2]
        %v744 = vld [vmem:[%s743] sm:$0xff]
        %v745 = vld [vmem:[%s743 + $0x8] sm:$0xff]
        %v746 = vld [vmem:[%s743 + $0x10] sm:$0xff]
        %v747 = vld [vmem:[%s743 + $0x18] sm:$0xff]
        %v748 = vld [vmem:[%s743 + $0x20] sm:$0xff]
        %v749 = vld [vmem:[%s743 + $0x28] sm:$0xff]
        %v750 = vld [vmem:[%s743 + $0x30] sm:$0xff]
        %v751 = vld [vmem:[%s743 + $0x38] sm:$0xff]
        %v752 = vld [vmem:[%s743 + $0x40] sm:$0xff]
        %v753 = vld [vmem:[%s743 + $0x48] sm:$0xff]
        %v754 = vld [vmem:[%s743 + $0x50] sm:$0xff]
        %v755 = vld [vmem:[%s743 + $0x58] sm:$0xff]
        %v756 = vld [vmem:[%s743 + $0x60] sm:$0xff]
        %v757 = vld [vmem:[%s743 + $0x68] sm:$0xff]
        %v758 = vld [vmem:[%s743 + $0x70] sm:$0xff]
        %v759 = vld [vmem:[%s743 + $0x78] sm:$0xff]
        %v760 = vpack.c.bf16 %v745, %v744
        %v761 = vpack.c.bf16 %v747, %v746
        %v762 = vpack.c.bf16 %v749, %v748
        %v763 = vpack.c.bf16 %v751, %v750
        %v764 = vpack.c.bf16 %v753, %v752
        %v765 = vpack.c.bf16 %v755, %v754
        %v766 = vpack.c.bf16 %v757, %v756
        %v767 = vpack.c.bf16 %v759, %v758
        %v768 = vunpack.c.l.bf16 %v760
        %v769 = vunpack.c.h.bf16 %v760
        %v770 = vunpack.c.l.bf16 %v761
        %v771 = vunpack.c.h.bf16 %v761
        %v772 = vunpack.c.l.bf16 %v762
        %v773 = vunpack.c.h.bf16 %v762
        %v774 = vunpack.c.l.bf16 %v763
        %v775 = vunpack.c.h.bf16 %v763
        %v776 = vunpack.c.l.bf16 %v764
        %v777 = vunpack.c.h.bf16 %v764
        %v778 = vunpack.c.l.bf16 %v765
        %v779 = vunpack.c.h.bf16 %v765
        %v780 = vunpack.c.l.bf16 %v766
        %v781 = vunpack.c.h.bf16 %v766
        %v782 = vunpack.c.l.bf16 %v767
        %v783 = vunpack.c.h.bf16 %v767
        %v784 = vsub.f32 %v744, %v768
        %v785 = vsub.f32 %v745, %v769
        %v786 = vsub.f32 %v746, %v770
        %v787 = vsub.f32 %v747, %v771
        %v788 = vsub.f32 %v748, %v772
        %v789 = vsub.f32 %v749, %v773
        %v790 = vsub.f32 %v750, %v774
        %v791 = vsub.f32 %v751, %v775
        %v792 = vsub.f32 %v752, %v776
        %v793 = vsub.f32 %v753, %v777
        %v794 = vsub.f32 %v754, %v778
        %v795 = vsub.f32 %v755, %v779
        %v796 = vsub.f32 %v756, %v780
        %v797 = vsub.f32 %v757, %v781
        %v798 = vsub.f32 %v758, %v782
        %v799 = vsub.f32 %v759, %v783
        %v800 = vpack.c.bf16 %v785, %v784
        %v801 = vpack.c.bf16 %v787, %v786
        %v802 = vpack.c.bf16 %v789, %v788
        %v803 = vpack.c.bf16 %v791, %v790
        %v804 = vpack.c.bf16 %v793, %v792
        %v805 = vpack.c.bf16 %v795, %v794
        %v806 = vpack.c.bf16 %v797, %v796
        %v807 = vpack.c.bf16 %v799, %v798
        %v809 = vsel %vm514, %v800, 0
        %v812 = vsel %vm514, %v801, 0
        %v815 = vsel %vm514, %v802, 0
        %v818 = vsel %vm514, %v803, 0
        %v821 = vsel %vm514, %v804, 0
        %v824 = vsel %vm514, %v805, 0
        %v827 = vsel %vm514, %v806, 0
        %v830 = vsel %vm514, %v807, 0
        %832 = vmatprep.subr.bf16.mxu0 0
        %833 = vmatpush1.bf16.xpose.msra.mxu0 %v809
        %834 = vmatprep.subr.bf16.mxu0 0
        %835 = vmatpush1.bf16.xpose.msra.mxu0 %v812
        %836 = vmatprep.subr.bf16.mxu0 0
        %837 = vmatpush1.bf16.xpose.msra.mxu0 %v815
        %838 = vmatprep.subr.bf16.mxu0 0
        %839 = vmatpush1.bf16.xpose.msra.mxu0 %v818
        %840 = vmatprep.subr.bf16.mxu0 0
        %841 = vmatpush1.bf16.xpose.msra.mxu0 %v821
        %842 = vmatprep.subr.bf16.mxu0 0
        %843 = vmatpush1.bf16.xpose.msra.mxu0 %v824
        %844 = vmatprep.subr.bf16.mxu0 0
        %845 = vmatpush1.bf16.xpose.msra.mxu0 %v827
        %846 = vmatprep.subr.bf16.mxu0 0
        %847 = vmatpush1.bf16.xpose.msra.mxu0 %v830
        %848 = vmatprep.subr.bf16.mxu0 0
        %849 = vmatpush1.bf16.xpose.msra.mxu0 0
        %850 = vmatprep.subr.bf16.mxu0 0
        %851 = vmatpush1.bf16.xpose.msra.mxu0 0
        %852 = vmatprep.subr.bf16.mxu0 0
        %853 = vmatpush1.bf16.xpose.msra.mxu0 0
        %854 = vmatprep.subr.bf16.mxu0 0
        %855 = vmatpush1.bf16.xpose.msra.mxu0 0
        %856 = vmatprep.subr.bf16.mxu0 0
        %857 = vmatpush1.bf16.xpose.msra.mxu0 0
        %858 = vmatprep.subr.bf16.mxu0 0
        %859 = vmatpush1.bf16.xpose.msra.mxu0 0
        %860 = vmatprep.subr.bf16.mxu0 0
        %861 = vmatpush1.bf16.xpose.msra.mxu0 0
        %862 = vmatprep.subr.bf16.mxu0 0
        %863 = vmatpush1.bf16.xpose.msra.mxu0 0
        %864 = vmatprep.mubr.bf16.mxu0 0
        %865 = vmatmul.mubr.bf16.gmra.mrb[0].mxu0 %v516
        %v866 = vpop.f32.mrb[0].mxu0
        %v867 = vadd.f32 0.0, %v866
        %v868 = vpop.f32.mrb[0].mxu0
        %v869 = vpop.f32.mrb[0].mxu0
        %v870 = vadd.f32 0.0, %v869
        %v871 = vpop.f32.mrb[0].mxu0
        %872 = vmatprep.mubr.bf16.mxu0 0
        %873 = vmatmul.mubr.bf16.gmra.mrb[0].mxu0 %v519
        %v874 = vpop.f32.mrb[0].mxu0
        %v875 = vadd.f32 0.0, %v874
        %v876 = vpop.f32.mrb[0].mxu0
        %v877 = vpop.f32.mrb[0].mxu0
        %v878 = vpop.f32.mrb[0].mxu0
        %879 = vdwg.mxu0
        %v881 = vsel %vm514, %v760, 0
        %v884 = vsel %vm514, %v761, 0
        %v887 = vsel %vm514, %v762, 0
        %v890 = vsel %vm514, %v763, 0
        %v893 = vsel %vm514, %v764, 0
        %v896 = vsel %vm514, %v765, 0
        %v899 = vsel %vm514, %v766, 0
        %v902 = vsel %vm514, %v767, 0
        %904 = vmatprep.subr.bf16.mxu0 0
        %905 = vmatpush1.bf16.xpose.msra.mxu0 %v881
        %906 = vmatprep.subr.bf16.mxu0 0
        %907 = vmatpush1.bf16.xpose.msra.mxu0 %v884
        %908 = vmatprep.subr.bf16.mxu0 0
        %909 = vmatpush1.bf16.xpose.msra.mxu0 %v887
        %910 = vmatprep.subr.bf16.mxu0 0
        %911 = vmatpush1.bf16.xpose.msra.mxu0 %v890
        %912 = vmatprep.subr.bf16.mxu0 0
        %913 = vmatpush1.bf16.xpose.msra.mxu0 %v893
        %914 = vmatprep.subr.bf16.mxu0 0
        %915 = vmatpush1.bf16.xpose.msra.mxu0 %v896
        %916 = vmatprep.subr.bf16.mxu0 0
        %917 = vmatpush1.bf16.xpose.msra.mxu0 %v899
        %918 = vmatprep.subr.bf16.mxu0 0
        %919 = vmatpush1.bf16.xpose.msra.mxu0 %v902
        %920 = vmatprep.subr.bf16.mxu0 0
        %921 = vmatpush1.bf16.xpose.msra.mxu0 0
        %922 = vmatprep.subr.bf16.mxu0 0
        %923 = vmatpush1.bf16.xpose.msra.mxu0 0
        %924 = vmatprep.subr.bf16.mxu0 0
        %925 = vmatpush1.bf16.xpose.msra.mxu0 0
        %926 = vmatprep.subr.bf16.mxu0 0
        %927 = vmatpush1.bf16.xpose.msra.mxu0 0
        %928 = vmatprep.subr.bf16.mxu0 0
        %929 = vmatpush1.bf16.xpose.msra.mxu0 0
        %930 = vmatprep.subr.bf16.mxu0 0
        %931 = vmatpush1.bf16.xpose.msra.mxu0 0
        %932 = vmatprep.subr.bf16.mxu0 0
        %933 = vmatpush1.bf16.xpose.msra.mxu0 0
        %934 = vmatprep.subr.bf16.mxu0 0
        %935 = vmatpush1.bf16.xpose.msra.mxu0 0
        %936 = vmatprep.mubr.bf16.mxu0 0
        %937 = vmatmul.mubr.bf16.gmra.mrb[0].mxu0 %v516
        %v938 = vpop.f32.mrb[0].mxu0
        %v939 = vadd.f32 %v867, %v938
        %v940 = vpop.f32.mrb[0].mxu0
        %v941 = vpop.f32.mrb[0].mxu0
        %v942 = vadd.f32 %v870, %v941
        %v943 = vpop.f32.mrb[0].mxu0
        %944 = vmatprep.mubr.bf16.mxu0 0
        %945 = vmatmul.mubr.bf16.gmra.mrb[0].mxu0 %v519
        %v946 = vpop.f32.mrb[0].mxu0
        %v947 = vadd.f32 %v875, %v946
        %v948 = vpop.f32.mrb[0].mxu0
        %v949 = vpop.f32.mrb[0].mxu0
        %v950 = vpop.f32.mrb[0].mxu0
        %951 = vdwg.mxu0
        %v952 = vlaneseq
        %v953 = vshrl.u32 %v952, 7
        %v954 = vsub.s32 1, %v953
        %v955 = vrot.slane %v432, %v954
        %vm956 = vcmp.eq.s32.totalorder %v437, %v955
        %vm957 = vcmp.eq.s32.totalorder %v438, %v955
        %vm958 = vcmp.eq.s32.totalorder %v439, %v955
        %v959 = vand.u32 2147483647, %v939
        %v960 = vand.u32 2147483647, %v942
        %v961 = vand.u32 2147483647, %v947
        %v962 = vsub.f32 0.0, %v959
        %v963 = vsub.f32 0.0, %v960
        %v964 = vsub.f32 0.0, %v961
        %v965 = vmul.f32 %v962, 1.442695
        %v966 = vpow.pop %v965
        %v967 = vmul.f32 %v963, 1.442695
        %v968 = vpow.pop %v967
        %v969 = vmul.f32 %v964, 1.442695
        %v970 = vpow.pop %v969
        %v971 = vadd.f32 %v966, 1.0
        %v972 = vadd.f32 %v968, 1.0
        %v973 = vadd.f32 %v970, 1.0
        %v974 = vlog2.pop %v971
        %v975 = vmul.f32 %v974, 0.6931472
        %v976 = vlog2.pop %v972
        %v977 = vmul.f32 %v976, 0.6931472
        %v978 = vlog2.pop %v973
        %v979 = vmul.f32 %v978, 0.6931472
        %v980 = vsub.f32 0.0, %v939
        %v981 = vsub.f32 0.0, %v942
        %v982 = vsub.f32 0.0, %v947
        %v983 = vsel %vm956, %v939, %v980
        %v984 = vsel %vm957, %v942, %v981
        %v985 = vsel %vm958, %v947, %v982
        %v986 = vsub.f32 0.0, %v983
        %v987 = vsub.f32 0.0, %v984
        %v988 = vsub.f32 0.0, %v985
        %v989 = vmax.f32 %v986, 0.0
        %v990 = vmax.f32 %v987, 0.0
        %v991 = vmax.f32 %v988, 0.0
        %v992 = vadd.f32 %v989, %v975
        %v993 = vadd.f32 %v990, %v977
        %v994 = vadd.f32 %v991, %v979
        %v995 = vsub.f32 0.0, %v992
        %v996 = vsub.f32 0.0, %v993
        %v997 = vsub.f32 0.0, %v994
        %v998 = vmul.f32 %v995, 1.442695
        %v999 = vpow.pop %v998
        %v1000 = vmul.f32 %v996, 1.442695
        %v1001 = vpow.pop %v1000
        %v1002 = vmul.f32 %v997, 1.442695
        %v1003 = vpow.pop %v1002
        %v1004 = vsub.f32 1.0, %v999
        %v1005 = vsub.f32 1.0, %v1001
        %v1006 = vsub.f32 1.0, %v1003
        %v1007 = vmul.f32 %v1004, %v1004
        %v1008 = vmul.f32 %v1005, %v1005
        %v1009 = vmul.f32 %v1006, %v1006
        %v1010 = vsel %vm956, 0.25, 0.75
        %v1011 = vsel %vm957, 0.25, 0.75
        %v1012 = vsel %vm958, 0.25, 0.75
        %v1013 = vmul.f32 %v1010, %v1007
        %v1014 = vmul.f32 %v1011, %v1008
        %v1015 = vmul.f32 %v1012, %v1009
        %v1016 = vmul.f32 %v1013, %v992
        %v1017 = vmul.f32 %v1014, %v993
        %v1018 = vmul.f32 %v1015, %v994
        %v1019 = vadd.f32 %v1016, %v1017
        %v1020 = vsel %vm733, %v1018, 0.0
        %v1021 = vadd.f32 %v1019, %v1020
        %v1022 = vrot.slane %v1021, 4
        %v1023 = vadd.f32 %v1021, %v1022
        %v1024 = vrot.slane %v1023, 2
        %v1025 = vadd.f32 %v1023, %v1024
        %v1026 = vrot.slane %v1025, 1
        %v1027 = vadd.f32 %v1025, %v1026
        %v1028 = vadd.f32 %v742, %v1027
        %v1029 = vld [vmem:[%s3] sm:$0x3]
        %v1030 = vld [vmem:[%s392] sm:$0x1]
        %v1031 = vld [vmem:[%s392 + $0x8] sm:$0x1]
        %1033 = vset.pattern.permute.xlu0 0
        %1034 = vperm.xlu0 %1033, %v1029
        %v1035 = vpop.permute.xlu0 %1034
        %v1036 = vrot.slane %v1035, 1
        %v1039 = vmul.f32 %v1030, %v1035
        %v1040 = vmul.f32 %v1031, %v1036
        %v1041 = vld [vmem:[%s392 + $0x1] sm:$0x1]
        %v1042 = vld [vmem:[%s392 + $0x9] sm:$0x1]
        %1043 = vset.pattern.permute.xlu0 1
        %1044 = vperm.xlu0 %1043, %v1029
        %v1045 = vpop.permute.xlu0 %1044
        %v1046 = vrot.slane %v1045, 1
        %v1049 = vmul.f32 %v1041, %v1045
        %v1050 = vmul.f32 %v1042, %v1046
        %v1051 = vld [vmem:[%s392 + $0x2] sm:$0x1]
        %v1052 = vld [vmem:[%s392 + $0xa] sm:$0x1]
        %v1053 = vmul.f32 %v1051, %v1035
        %v1054 = vmul.f32 %v1052, %v1036
        %v1055 = vld [vmem:[%s392 + $0x3] sm:$0x1]
        %v1056 = vld [vmem:[%s392 + $0xb] sm:$0x1]
        %v1057 = vmul.f32 %v1055, %v1045
        %v1058 = vmul.f32 %v1056, %v1046
        %v1059 = vld [vmem:[%s392 + $0x4] sm:$0x1]
        %v1060 = vld [vmem:[%s392 + $0xc] sm:$0x1]
        %v1061 = vld [vmem:[%s392 + $0x5] sm:$0x1]
        %v1062 = vld [vmem:[%s392 + $0xd] sm:$0x1]
        %v1063 = vld [vmem:[%s392 + $0x6] sm:$0x1]
        %v1064 = vld [vmem:[%s392 + $0xe] sm:$0x1]
        %v1065 = vld [vmem:[%s392 + $0x7] sm:$0x1]
        %v1066 = vld [vmem:[%s392 + $0xf] sm:$0x1]
        %v1067 = vmul.f32 %v1063, 0.5
        %v1068 = vmul.f32 %v1064, 0.5
        %v1069 = vsub.f32 %v1059, %v1067
        %v1070 = vsub.f32 %v1060, %v1068
        %v1071 = vmul.f32 %v1065, 0.5
        %v1072 = vmul.f32 %v1066, 0.5
        %v1073 = vsub.f32 %v1061, %v1071
        %v1074 = vsub.f32 %v1062, %v1072
        %v1075 = vadd.f32 %v1059, %v1067
        %v1076 = vadd.f32 %v1060, %v1068
        %v1077 = vadd.f32 %v1061, %v1071
        %v1078 = vadd.f32 %v1062, %v1072
        %v1079 = vsub.f32 %v1039, %v1069
        %v1080 = vsub.f32 %v1040, %v1070
        %v1081 = vand.u32 2147483647, %v1079
        %v1082 = vand.u32 2147483647, %v1080
        %v1083 = vsub.f32 %v1049, %v1073
        %v1084 = vsub.f32 %v1050, %v1074
        %v1085 = vand.u32 2147483647, %v1083
        %v1086 = vand.u32 2147483647, %v1084
        %v1087 = vadd.f32 %v1081, %v1085
        %v1088 = vadd.f32 %v1082, %v1086
        %v1089 = vsub.f32 %v1053, %v1075
        %v1090 = vsub.f32 %v1054, %v1076
        %v1091 = vand.u32 2147483647, %v1089
        %v1092 = vand.u32 2147483647, %v1090
        %v1093 = vadd.f32 %v1087, %v1091
        %v1094 = vadd.f32 %v1088, %v1092
        %v1095 = vsub.f32 %v1057, %v1077
        %v1096 = vsub.f32 %v1058, %v1078
        %v1097 = vand.u32 2147483647, %v1095
        %v1098 = vand.u32 2147483647, %v1096
        %v1099 = vadd.f32 %v1093, %v1097
        %v1100 = vadd.f32 %v1094, %v1098
        %v1101 = vsub.f32 %v1053, %v1039
        %v1102 = vsub.f32 %v1054, %v1040
        %v1103 = vsub.f32 %v1057, %v1049
        %v1104 = vsub.f32 %v1058, %v1050
        %v1105 = vmul.f32 %v1101, %v1103
        %v1106 = vmul.f32 %v1102, %v1104
        %v1107 = vsub.f32 %v1075, %v1069
        %v1108 = vsub.f32 %v1076, %v1070
        %v1109 = vsub.f32 %v1077, %v1073
        %v1110 = vsub.f32 %v1078, %v1074
        %v1111 = vmul.f32 %v1107, %v1109
        %v1112 = vmul.f32 %v1108, %v1110
        %v1113 = vmin.f32 %v1053, %v1075
        %v1114 = vmin.f32 %v1054, %v1076
        %v1115 = vmax.f32 %v1039, %v1069
        %v1116 = vmax.f32 %v1040, %v1070
        %v1117 = vsub.f32 %v1113, %v1115
        %v1118 = vsub.f32 %v1114, %v1116
        %v1119 = vmax.f32 %v1117, 0.0
        %v1120 = vmax.f32 %v1118, 0.0
        %v1121 = vmin.f32 %v1057, %v1077
        %v1122 = vmin.f32 %v1058, %v1078
        %v1123 = vmax.f32 %v1049, %v1073
        %v1124 = vmax.f32 %v1050, %v1074
        %v1125 = vsub.f32 %v1121, %v1123
        %v1126 = vsub.f32 %v1122, %v1124
        %v1127 = vmax.f32 %v1125, 0.0
        %v1128 = vmax.f32 %v1126, 0.0
        %v1129 = vmul.f32 %v1119, %v1127
        %v1130 = vmul.f32 %v1120, %v1128
        %v1131 = vadd.f32 %v1105, %v1111
        %v1132 = vadd.f32 %v1106, %v1112
        %v1133 = vsub.f32 %v1131, %v1129
        %v1134 = vsub.f32 %v1132, %v1130
        %vm1135 = vcmp.gt.f32.partialorder %v1133, 0.0
        %vm1136 = vcmp.gt.f32.partialorder %v1134, 0.0
        %v1137 = vsel %vm1135, %v1133, 1.0
        %v1138 = vsel %vm1136, %v1134, 1.0
        %v1139 = vrcp.pop %v1137
        %v1140 = vmul.f32 %v1129, %v1139
        %v1141 = vrcp.pop %v1138
        %v1142 = vmul.f32 %v1130, %v1141
        %v1143 = vmax.f32 %v1053, %v1075
        %v1144 = vmax.f32 %v1054, %v1076
        %v1145 = vmin.f32 %v1039, %v1069
        %v1146 = vmin.f32 %v1040, %v1070
        %v1147 = vsub.f32 %v1143, %v1145
        %v1148 = vsub.f32 %v1144, %v1146
        %v1149 = vmax.f32 %v1057, %v1077
        %v1150 = vmax.f32 %v1058, %v1078
        %v1151 = vmin.f32 %v1049, %v1073
        %v1152 = vmin.f32 %v1050, %v1074
        %v1153 = vsub.f32 %v1149, %v1151
        %v1154 = vsub.f32 %v1150, %v1152
        %v1155 = vmul.f32 %v1147, %v1153
        %v1156 = vmul.f32 %v1148, %v1154
        %v1157 = vsub.f32 %v1155, %v1133
        %v1158 = vsub.f32 %v1156, %v1134
        %vm1159 = vcmp.gt.f32.partialorder %v1155, 0.0
        %vm1160 = vcmp.gt.f32.partialorder %v1156, 0.0
        %v1161 = vsel %vm1159, %v1155, 1.0
        %v1162 = vsel %vm1160, %v1156, 1.0
        %v1163 = vrcp.pop %v1161
        %v1164 = vmul.f32 %v1157, %v1163
        %v1165 = vrcp.pop %v1162
        %v1166 = vmul.f32 %v1158, %v1165
        %v1167 = vsub.f32 %v1140, %v1164
        %v1168 = vsub.f32 %v1142, %v1166
        %v1170 = vrot.slane %v435, 1
        %v1173 = vmul.f32 %v1099, %v435
        %v1174 = vmul.f32 %v1100, %v1170
        %v1177 = vrot.slane %v1174, 7
        %vm1178 = vcmask 1041409
        %v1179 = vsel %vm1178, %v1177, %v1173
        %vm1181 = vcmask 1041408
        %v1182 = vsel %vm1181, %v1179, 0.0
        %v1183 = vrot.slane %v1182, 4
        %v1184 = vadd.f32 %v1182, %v1183
        %v1185 = vrot.slane %v1184, 2
        %v1186 = vadd.f32 %v1184, %v1185
        %v1187 = vrot.slane %v1186, 1
        %v1188 = vadd.f32 %v1186, %v1187
        %v1189 = vsub.f32 1.0, %v1167
        %v1190 = vsub.f32 1.0, %v1168
        %v1191 = vmul.f32 %v1189, %v435
        %v1192 = vmul.f32 %v1190, %v1170
        %v1195 = vrot.slane %v1192, 7
        %v1196 = vsel %vm1178, %v1195, %v1191
        %v1198 = vsel %vm1181, %v1196, 0.0
        %v1199 = vrot.slane %v1198, 4
        %v1200 = vadd.f32 %v1198, %v1199
        %v1201 = vrot.slane %v1200, 2
        %v1202 = vadd.f32 %v1200, %v1201
        %v1203 = vrot.slane %v1202, 1
        %v1204 = vadd.f32 %v1202, %v1203
        %v1205 = vsel %vm1181, %v435, 0.0
        %v1206 = vrot.slane %v1205, 4
        %v1207 = vadd.f32 %v1205, %v1206
        %v1208 = vrot.slane %v1207, 2
        %v1209 = vadd.f32 %v1207, %v1208
        %v1210 = vrot.slane %v1209, 1
        %v1211 = vadd.f32 %v1209, %v1210
        %1212 = vst [vmem:[%s430] sm:$0x1] %v1028
        %1213 = vst [vmem:[%s430 + $0x1] sm:$0x1] %v1188
        %1214 = vst [vmem:[%s430 + $0x2] sm:$0x1] %v1204
        %1215 = vst [vmem:[%s430 + $0x3] sm:$0x1] %v1211
        %p1216 = scmp.lt.s32.totalorder %s15, 1
        %s1217 = scalar_select %p1216, %s15, 1
        %s1218 = smul.addr %s1217, 8
        %s1219 = scalar_lea.vmem %s4, %s1218
        // Predicated region
        $region113: #{set_criterion_forward.1} parent=103 // pred_check
          %p1220 = pneg %p132
        $region114: #{set_criterion_forward.1} parent=103 // pred_check_branch
          %1222 = sbr.rel (%p1220) target = $region116
        $region115: #{set_criterion_forward.1} parent=103 // pred_region
          _
        $region116: #{set_criterion_forward.1} parent=103 // pred_fallthru
          _
      $region104: #{set_criterion_forward.1} parent=5 // pred_fallthru
        _
      %p1223 = scmp.le.s32.totalorder 2, %s10
      // Predicated region
      $region117: #{set_criterion_forward.1} parent=5 // pred_check
        %p1224 = pneg %p1223
      $region118: #{set_criterion_forward.1} parent=5 // pred_check_branch
        %1226 = sbr.rel (%p1224) target = $region120
      $region119: #{set_criterion_forward.1} parent=5 // pred_region
        %s1227 = ssub.s32 %s10, 2
        // Predicated region
        $region121: #{set_criterion_forward.1} parent=119 // pred_check
          %p1228 = pneg %p138
        $region122: #{set_criterion_forward.1} parent=119 // pred_check_branch
          %1230 = sbr.rel (%p1228) target = $region124
        $region123: #{set_criterion_forward.1} parent=119 // pred_region
          %p1231 = scmp.lt.s32.totalorder %s16, 1
          %s1232 = scalar_select %p1231, %s16, 1
          %s1233 = smul.addr %s1232, 8
          %s1234 = scalar_lea.vmem %s4, %s1233
        $region124: #{set_criterion_forward.1} parent=119 // pred_fallthru
          _
      $region120: #{set_criterion_forward.1} parent=5 // pred_fallthru
        _
    $region6: #{set_criterion_forward.1} parent=1 // loop_footer
      %s14 = sadd.s32 1, %s10
    $region7: #{set_criterion_forward.1} parent=1 // loop_footer_branch
      %9 = sbr.rel target = $region3
    $region8: #{set_criterion_forward.1} parent=1 // loop_exit
      _

</llo_original>
